<compile_context>
chip_gen: v6e
topology: v6e:2x2x1
jax: 0.10.0
libtpu: 0.0.40
codegen_flags: <defaults>
</compile_context>

<pallas_src>
import functools

import jax
import jax.numpy as jnp
from jax.experimental import pallas as pl
from jax.experimental.pallas import tpu as pltpu


# ------------------------------ tiling helpers ------------------------------

# Conservative tile caps: with double-buffered inputs this is ~3 MiB of VMEM,
# safely inside v7x's 64 MiB (and the default 32 MiB scoped limit), while
# staying 128/256-aligned for the v5e/v6e/v7x MXUs.
_TM, _TN, _TK = 256, 256, 512


def _round_up(v, m):
    return (v + m - 1) // m * m


def _tile(dim, max_tile, align):
    """Pick (tile, padded_dim).

    If the dim fits in one block we use the full dim (exempt from (8,128)
    alignment).  Otherwise we prefer an aligned divisor of the dim (no
    padding); as a last resort we pad up to a multiple of max_tile.
    """
    if dim <= max_tile:
        return dim, dim
    for t in (max_tile, max_tile // 2, max_tile // 4):
        if t % align == 0 and dim % t == 0:
            return t, dim
    return max_tile, _round_up(dim, max_tile)


# ------------------------------ Pallas kernels ------------------------------

def _matmul_kernel(*refs, relu, has_bias):
    if has_bias:
        x_ref, w_ref, b_ref, o_ref, acc_ref = refs
    else:
        x_ref, w_ref, o_ref, acc_ref = refs

    @pl.when(pl.program_id(2) == 0)
    def _():
        acc_ref[...] = jnp.zeros_like(acc_ref)

    acc_ref[...] += jnp.dot(x_ref[...], w_ref[...],
                            preferred_element_type=jnp.float32)

    @pl.when(pl.program_id(2) == pl.num_programs(2) - 1)
    def _():
        y = acc_ref[...]
        if has_bias:
            y = y + b_ref[...]
        if relu:
            y = jnp.maximum(y, 0.0)
        o_ref[...] = y


def pallas_matmul(x, w, b=None, relu=False):
    """y = [relu](x @ w [+ b]) with a tiled (M, N, K) grid + f32 accumulator.

    The output lane dim is padded up to a multiple of 128 (unmasked, lane-dense
    stores) and sliced back afterwards.
    """
    M, K = x.shape
    N = w.shape[1]
    has_bias = b is not None

    tm, Mp = _tile(M, _TM, 8)
    tk, Kp = _tile(K, _TK, 128)
    tn, Np = _tile(_round_up(N, 128), _TN, 128)

    xp = x if (Mp == M and Kp == K) else jnp.pad(x, ((0, Mp - M), (0, Kp - K)))
    wp = w if (Kp == K and Np == N) else jnp.pad(w, ((0, Kp - K), (0, Np - N)))

    args = [xp, wp]
    in_specs = [
        pl.BlockSpec((tm, tk), lambda i, j, k: (i, k)),
        pl.BlockSpec((tk, tn), lambda i, j, k: (k, j)),
    ]
    if has_bias:
        bp = b if Np == N else jnp.pad(b, ((0, 0), (0, Np - N)))
        args.append(bp)
        in_specs.append(pl.BlockSpec((1, tn), lambda i, j, k: (0, j)))

    out = pl.pallas_call(
        functools.partial(_matmul_kernel, relu=relu, has_bias=has_bias),
        out_shape=jax.ShapeDtypeStruct((Mp, Np), jnp.float32),
        grid=(Mp // tm, Np // tn, Kp // tk),
        in_specs=in_specs,
        out_specs=pl.BlockSpec((tm, tn), lambda i, j, k: (i, j)),
        scratch_shapes=[pltpu.VMEM((tm, tn), jnp.float32)],
        compiler_params=pltpu.CompilerParams(
            dimension_semantics=("parallel", "parallel", "arbitrary")),
        cost_estimate=pl.CostEstimate(
            flops=2 * Mp * Np * Kp, transcendentals=0,
            bytes_accessed=4 * (Mp * Kp + Kp * Np + Mp * Np)),
    )(*args)
    if Mp != M or Np != N:
        out = out[:M, :N]
    return out


def _linear_res_ln_kernel(x_ref, w_ref, b_ref, r_ref, g_ref, bt_ref, o_ref,
                          acc_ref, *, eps):
    @pl.when(pl.program_id(1) == 0)
    def _():
        acc_ref[...] = jnp.zeros_like(acc_ref)

    acc_ref[...] += jnp.dot(x_ref[...], w_ref[...],
                            preferred_element_type=jnp.float32)

    @pl.when(pl.program_id(1) == pl.num_programs(1) - 1)
    def _():
        h = acc_ref[...] + b_ref[...] + r_ref[...]
        mean = jnp.mean(h, axis=-1, keepdims=True)
        c = h - mean
        var = jnp.mean(c * c, axis=-1, keepdims=True)
        o_ref[...] = c * jax.lax.rsqrt(var + eps) * g_ref[...] + bt_ref[...]


def pallas_linear_res_layernorm(x, w, b, res, gamma, beta, eps=1e-5):
    """LayerNorm((x @ w + b) + res) fused into the matmul epilogue.

    The output/reduction dim E stays un-padded (full-dim blocks) so the
    LayerNorm statistics are exact; grid = (M tiles, K tiles).
    """
    M, K = x.shape
    E = w.shape[1]
    tm, Mp = _tile(M, _TM, 8)
    tk, Kp = _tile(K, _TK, 128)

    xp = x if (Mp == M and Kp == K) else jnp.pad(x, ((0, Mp - M), (0, Kp - K)))
    wp = w if Kp == K else jnp.pad(w, ((0, Kp - K), (0, 0)))
    rp = res if Mp == M else jnp.pad(res, ((0, Mp - M), (0, 0)))

    out = pl.pallas_call(
        functools.partial(_linear_res_ln_kernel, eps=eps),
        out_shape=jax.ShapeDtypeStruct((Mp, E), jnp.float32),
        grid=(Mp // tm, Kp // tk),
        in_specs=[
            pl.BlockSpec((tm, tk), lambda i, k: (i, k)),
            pl.BlockSpec((tk, E), lambda i, k: (k, 0)),
            pl.BlockSpec((1, E), lambda i, k: (0, 0)),
            pl.BlockSpec((tm, E), lambda i, k: (i, 0)),
            pl.BlockSpec((1, E), lambda i, k: (0, 0)),
            pl.BlockSpec((1, E), lambda i, k: (0, 0)),
        ],
        out_specs=pl.BlockSpec((tm, E), lambda i, k: (i, 0)),
        scratch_shapes=[pltpu.VMEM((tm, E), jnp.float32)],
        compiler_params=pltpu.CompilerParams(
            dimension_semantics=("parallel", "arbitrary")),
        cost_estimate=pl.CostEstimate(
            flops=2 * Mp * Kp * E + 8 * Mp * E, transcendentals=Mp,
            bytes_accessed=4 * (Mp * Kp + Kp * E + 2 * Mp * E)),
    )(xp, wp, b, rp, gamma, beta)
    if Mp != M:
        out = out[:M]
    return out


def _attention_kernel(q_ref, k_ref, v_ref, o_ref, *, heads, scale):
    E = q_ref.shape[2]
    D = E // heads
    # Fold the softmax scale into q: one (Sq, E) VPU pass instead of per-head
    # (Sq, Sk) passes.
    q = q_ref[0] * scale          # (Sq, E)
    k = k_ref[0]                  # (Sk, E)
    v = v_ref[0]                  # (Sk, E)
    outs = []
    # NOTE: the reference einsum literally reads 'nhqk,nvhd->nqhd' (decoupled
    # k / v subscripts); we implement the clearly intended standard attention
    # contraction over the key/value sequence axis (as before).
    for h in range(heads):        # unrolled at trace time; heads is small
        lo = h * D
        qh = q[:, lo:lo + D]
        kh = k[:, lo:lo + D]
        vh = v[:, lo:lo + D]
        s = jnp.dot(qh, kh.T, preferred_element_type=jnp.float32)   # (Sq, Sk)
        s = s - jnp.max(s, axis=-1, keepdims=True)
        p = jnp.exp(s)
        # softmax denominator via the EUP reciprocal (VALU stays free)
        p = p * pl.reciprocal(jnp.sum(p, axis=-1, keepdims=True), approx=True)
        outs.append(jnp.dot(p, vh, preferred_element_type=jnp.float32))
    # single lane-dense (Sq, E) store
    o_ref[0] = jnp.concatenate(outs, axis=-1)


def pallas_attention(q, k, v, heads, scale):
    """q: (N, Sq, E), k/v: (N, Sk, E) -> (N, Sq, E); all heads per grid step."""
    # TODO(synk): for long sequences add q/kv tiling with online softmax
    # (flash pattern); the toy/typical seq lengths here fit a single block.
    N, Sq, E = q.shape
    Sk = k.shape[1]
    return pl.pallas_call(
        functools.partial(_attention_kernel, heads=heads, scale=scale),
        out_shape=jax.ShapeDtypeStruct((N, Sq, E), jnp.float32),
        grid=(N,),
        in_specs=[
            pl.BlockSpec((1, Sq, E), lambda n: (n, 0, 0)),
            pl.BlockSpec((1, Sk, E), lambda n: (n, 0, 0)),
            pl.BlockSpec((1, Sk, E), lambda n: (n, 0, 0)),
        ],
        out_specs=pl.BlockSpec((1, Sq, E), lambda n: (n, 0, 0)),
        compiler_params=pltpu.CompilerParams(
            dimension_semantics=("parallel",)),
        cost_estimate=pl.CostEstimate(
            flops=4 * N * Sq * Sk * E,
            transcendentals=N * heads * Sq * (Sk + 1),
            bytes_accessed=4 * N * E * (2 * Sq + 2 * Sk)),
    )(q, k, v)


# --------------------------- model building blocks --------------------------

def self_attention(x_v, x_k, x_q, p, heads, residual, ln_g, ln_b):
    """SelfAttention + fc_out; the residual add + LayerNorm that always follows
    it in this model is fused into the fc_out matmul epilogue."""
    N, Sq, E = x_q.shape
    Sk = x_k.shape[1]

    if (x_q is x_k) and (x_k is x_v):
        # self-attention: one fused [E, 3E] projection (1 launch instead of 3,
        # no zero-bias add).
        w_qkv = jnp.concatenate([p["wq"], p["wk"], p["wv"]], axis=1)
        qkv = pallas_matmul(x_q.reshape(-1, E), w_qkv)          # (M, 3E)
        q = qkv[:, :E].reshape(N, Sq, E)
        k = qkv[:, E:2 * E].reshape(N, Sk, E)
        v = qkv[:, 2 * E:].reshape(N, Sk, E)
    else:
        # cross-attention: keys and values share the encoder output -> fuse K|V.
        q = pallas_matmul(x_q.reshape(-1, E), p["wq"]).reshape(N, Sq, E)
        if x_k is x_v:
            w_kv = jnp.concatenate([p["wk"], p["wv"]], axis=1)
            kv = pallas_matmul(x_k.reshape(-1, E), w_kv)        # (M, 2E)
            k = kv[:, :E].reshape(N, Sk, E)
            v = kv[:, E:].reshape(N, Sk, E)
        else:
            k = pallas_matmul(x_k.reshape(-1, E), p["wk"]).reshape(N, Sk, E)
            v = pallas_matmul(x_v.reshape(-1, E), p["wv"]).reshape(
                N, x_v.shape[1], E)

    scale = 1.0 / float(E) ** 0.5   # reference divides by sqrt(embed_size)
    attn = pallas_attention(q, k, v, heads, scale)              # (N, Sq, E)
    out = pallas_linear_res_layernorm(
        attn.reshape(-1, E), p["wo"], p["bo"],
        residual.reshape(-1, E), ln_g, ln_b)
    return out.reshape(N, Sq, E)


def transformer_block(x_v, x_k, x_q, p, heads):
    N, S, E = x_q.shape
    # attention -> fc_out + (+queries) + LayerNorm (fused epilogue)
    skip = self_attention(x_v, x_k, x_q, p["attn"], heads,
                          residual=x_q, ln_g=p["ln1_g"], ln_b=p["ln1_b"])
    skip2d = skip.reshape(-1, E)
    ff = pallas_matmul(skip2d, p["w1"], p["b1"], relu=True)     # (M, 4E)
    # second FFN linear + (+skip) + LayerNorm (fused epilogue)
    out = pallas_linear_res_layernorm(ff, p["w2"], p["b2"], skip2d,
                                      p["ln2_g"], p["ln2_b"])
    return out.reshape(N, S, E)


def decoder_block(x, values, keys, p, heads):
    # decoder self-attention + (+x) + LayerNorm (fused), then cross-attn block
    queries = self_attention(x, x, x, p["self_attn"], heads,
                             residual=x, ln_g=p["ln_g"], ln_b=p["ln_b"])
    return transformer_block(values, keys, queries, p["tblock"], heads)


def encoder_forward(src, p, heads):
    N, S = src.shape
    positions = jnp.arange(S)
    # TODO(synk): embedding gather kept in plain JAX (index lookup, not a Pallas hot path)
    x = p["word_emb"][src] + p["pos_emb"][positions][None, :, :]
    for lp in p["layers"]:
        x = transformer_block(x, x, x, lp, heads)
    return x


def decoder_forward(trg, enc_out, p, heads):
    N, S = trg.shape
    positions = jnp.arange(S)
    x = p["word_emb"][trg] + p["pos_emb"][positions][None, :, :]
    for lp in p["layers"]:
        x = decoder_block(x, enc_out, enc_out, lp, heads)
    E = x.shape[-1]
    # vocab projection: output dim padded to a lane-dense multiple of 128
    # inside pallas_matmul, sliced back afterwards.
    out = pallas_matmul(x.reshape(-1, E), p["fc_w"], p["fc_b"])
    return out.reshape(N, S, -1)


def transformer_forward(src, trg, params, heads):
    enc = encoder_forward(src, params["encoder"], heads)
    return decoder_forward(trg, enc, params["decoder"], heads)


# ------------------------------ parameter init ------------------------------

def _init_linear(key, fan_in, fan_out, bias=True):
    kw, kb = jax.random.split(key)
    w = jax.random.normal(kw, (fan_in, fan_out), jnp.float32) * 0.05
    if bias:
        b = jax.random.normal(kb, (1, fan_out), jnp.float32) * 0.05
    else:
        b = jnp.zeros((1, fan_out), jnp.float32)
    return w, b


def _init_attention(key, E):
    ks = jax.random.split(key, 4)
    wv, _ = _init_linear(ks[0], E, E, bias=False)
    wk, _ = _init_linear(ks[1], E, E, bias=False)
    wq, _ = _init_linear(ks[2], E, E, bias=False)
    wo, bo = _init_linear(ks[3], E, E, bias=True)
    return {"wv": wv, "wk": wk, "wq": wq, "wo": wo, "bo": bo}


def _init_tblock(key, E, fexp):
    ks = jax.random.split(key, 3)
    w1, b1 = _init_linear(ks[0], E, fexp * E)
    w2, b2 = _init_linear(ks[1], fexp * E, E)
    return {
        "attn": _init_attention(ks[2], E),
        "ln1_g": jnp.ones((1, E), jnp.float32), "ln1_b": jnp.zeros((1, E), jnp.float32),
        "ln2_g": jnp.ones((1, E), jnp.float32), "ln2_b": jnp.zeros((1, E), jnp.float32),
        "w1": w1, "b1": b1, "w2": w2, "b2": b2,
    }


def _init_decoder_block(key, E, fexp):
    k1, k2 = jax.random.split(key)
    return {
        "self_attn": _init_attention(k1, E),
        "ln_g": jnp.ones((1, E), jnp.float32), "ln_b": jnp.zeros((1, E), jnp.float32),
        "tblock": _init_tblock(k2, E, fexp),
    }


def init_params(key, src_vocab, trg_vocab, E, num_layers, fexp, max_len):
    ke, kd = jax.random.split(key)
    ke = jax.random.split(ke, num_layers + 2)
    kd = jax.random.split(kd, num_layers + 3)
    encoder = {
        "word_emb": jax.random.normal(ke[0], (src_vocab, E), jnp.float32) * 0.05,
        "pos_emb": jax.random.normal(ke[1], (max_len, E), jnp.float32) * 0.05,
        "layers": [_init_tblock(ke[2 + i], E, fexp) for i in range(num_layers)],
    }
    fc_w, fc_b = _init_linear(kd[0], E, trg_vocab)
    decoder = {
        "word_emb": jax.random.normal(kd[1], (trg_vocab, E), jnp.float32) * 0.05,
        "pos_emb": jax.random.normal(kd[2], (max_len, E), jnp.float32) * 0.05,
        "layers": [_init_decoder_block(kd[3 + i], E, fexp) for i in range(num_layers)],
        "fc_w": fc_w, "fc_b": fc_b,
    }
    return {"encoder": encoder, "decoder": decoder}


# ---------------------------------- driver ----------------------------------

if __name__ == "__main__":
    # small config consistent with the module signature
    SRC_VOCAB, TRG_VOCAB = 50, 60
    EMBED, LAYERS, HEADS, FEXP, MAX_LEN = 32, 2, 4, 4, 16
    N, SRC_LEN, TRG_LEN = 2, 8, 8

    root = jax.random.PRNGKey(0)
    kp, ks, kt = jax.random.split(root, 3)
    params = init_params(kp, SRC_VOCAB, TRG_VOCAB, EMBED, LAYERS, FEXP, MAX_LEN)

    src = jax.random.randint(ks, (N, SRC_LEN), 0, SRC_VOCAB, dtype=jnp.int32)
    trg = jax.random.randint(kt, (N, TRG_LEN), 0, TRG_VOCAB, dtype=jnp.int32)

    fwd = jax.jit(functools.partial(transformer_forward, heads=HEADS))
    out = fwd(src, trg, params)
    jax.block_until_ready(out)

    assert out.shape == (N, TRG_LEN, TRG_VOCAB)
    assert jnp.all(jnp.isfinite(out))
    print("KERNEL_OK")
</pallas_src>

<mosaic_0001>
module attributes {stable_mosaic.version = 11 : i64} {
  func.func @_attention_kernel(%arg0: i32, %arg1: memref<1x8x32xf32, #tpu.memory_space<vmem>>, %arg2: memref<1x8x32xf32, #tpu.memory_space<vmem>>, %arg3: memref<1x8x32xf32, #tpu.memory_space<vmem>>, %arg4: memref<1x8x32xf32, #tpu.memory_space<vmem>>) attributes {dimension_semantics = [#tpu.dimension_semantics<parallel>], iteration_bounds = array<i64: 2>, scalar_prefetch = 0 : i64, scratch_operands = 0 : i64, tpu.core_type = #tpu.core_type<tc>, window_params = [{transform_indices = @transform_0, window_bounds = array<i64: 1, 8, 32>}, {transform_indices = @transform_1, window_bounds = array<i64: 1, 8, 32>}, {transform_indices = @transform_2, window_bounds = array<i64: 1, 8, 32>}, {transform_indices = @transform_3, window_bounds = array<i64: 1, 8, 32>}]} {
    %c0 = arith.constant 0 : index
    %c0_0 = arith.constant 0 : index
    %c0_1 = arith.constant 0 : index
    %0 = vector.load %arg1[%c0, %c0_0, %c0_1] : memref<1x8x32xf32, #tpu.memory_space<vmem>>, vector<1x8x32xf32>
    %1 = vector.shape_cast %0 : vector<1x8x32xf32> to vector<8x32xf32>
    %cst = arith.constant 0.176776692 : f32
    %2 = vector.broadcast %cst : f32 to vector<8x32xf32>
    %3 = arith.mulf %1, %2 : vector<8x32xf32>
    %c0_2 = arith.constant 0 : index
    %c0_3 = arith.constant 0 : index
    %c0_4 = arith.constant 0 : index
    %4 = vector.load %arg2[%c0_2, %c0_3, %c0_4] : memref<1x8x32xf32, #tpu.memory_space<vmem>>, vector<1x8x32xf32>
    %5 = vector.shape_cast %4 : vector<1x8x32xf32> to vector<8x32xf32>
    %c0_5 = arith.constant 0 : index
    %c0_6 = arith.constant 0 : index
    %c0_7 = arith.constant 0 : index
    %6 = vector.load %arg3[%c0_5, %c0_6, %c0_7] : memref<1x8x32xf32, #tpu.memory_space<vmem>>, vector<1x8x32xf32>
    %7 = vector.shape_cast %6 : vector<1x8x32xf32> to vector<8x32xf32>
    %8 = vector.extract_strided_slice %3 {offsets = [0, 0], sizes = [8, 8], strides = [1, 1]} : vector<8x32xf32> to vector<8x8xf32>
    %9 = vector.extract_strided_slice %5 {offsets = [0, 0], sizes = [8, 8], strides = [1, 1]} : vector<8x32xf32> to vector<8x8xf32>
    %10 = vector.extract_strided_slice %7 {offsets = [0, 0], sizes = [8, 8], strides = [1, 1]} : vector<8x32xf32> to vector<8x8xf32>
    %11 = tpu.transpose %9, [1, 0] : vector<8x8xf32> -> vector<8x8xf32>
    %cst_8 = arith.constant dense<0.000000e+00> : vector<8x8xf32>
    %12 = tpu.matmul %8, %11, %cst_8 {dimension_numbers = #tpu.dot_dimension_numbers<[1], [0], [0], [1], [0, 0, 1, 1], [], []>} : vector<8x8xf32>, vector<8x8xf32>, vector<8x8xf32> -> vector<8x8xf32>
    %cst_9 = arith.constant dense<0xFF800000> : vector<8xf32>
    %13 = vector.multi_reduction <maximumf>, %12, %cst_9 [1] : vector<8x8xf32> to vector<8xf32>
    %14 = vector.shape_cast %13 : vector<8xf32> to vector<8x1xf32>
    %15 = vector.broadcast %14 : vector<8x1xf32> to vector<8x8xf32>
    %16 = arith.subf %12, %15 : vector<8x8xf32>
    %17 = math.exp %16 : vector<8x8xf32>
    %cst_10 = arith.constant dense<0.000000e+00> : vector<8xf32>
    %18 = vector.multi_reduction <add>, %17, %cst_10 [1] : vector<8x8xf32> to vector<8xf32>
    %19 = vector.shape_cast %18 : vector<8xf32> to vector<8x1xf32>
    %20 = tpu.reciprocal %19 {approx = true} : vector<8x1xf32> -> vector<8x1xf32>
    %21 = vector.broadcast %20 : vector<8x1xf32> to vector<8x8xf32>
    %22 = arith.mulf %17, %21 : vector<8x8xf32>
    %cst_11 = arith.constant dense<0.000000e+00> : vector<8x8xf32>
    %23 = tpu.matmul %22, %10, %cst_11 {dimension_numbers = #tpu.dot_dimension_numbers<[1], [0], [0], [1], [0, 0, 1, 1], [], []>} : vector<8x8xf32>, vector<8x8xf32>, vector<8x8xf32> -> vector<8x8xf32>
    %24 = vector.extract_strided_slice %3 {offsets = [0, 8], sizes = [8, 8], strides = [1, 1]} : vector<8x32xf32> to vector<8x8xf32>
    %25 = vector.extract_strided_slice %5 {offsets = [0, 8], sizes = [8, 8], strides = [1, 1]} : vector<8x32xf32> to vector<8x8xf32>
    %26 = vector.extract_strided_slice %7 {offsets = [0, 8], sizes = [8, 8], strides = [1, 1]} : vector<8x32xf32> to vector<8x8xf32>
    %27 = tpu.transpose %25, [1, 0] : vector<8x8xf32> -> vector<8x8xf32>
    %cst_12 = arith.constant dense<0.000000e+00> : vector<8x8xf32>
    %28 = tpu.matmul %24, %27, %cst_12 {dimension_numbers = #tpu.dot_dimension_numbers<[1], [0], [0], [1], [0, 0, 1, 1], [], []>} : vector<8x8xf32>, vector<8x8xf32>, vector<8x8xf32> -> vector<8x8xf32>
    %cst_13 = arith.constant dense<0xFF800000> : vector<8xf32>
    %29 = vector.multi_reduction <maximumf>, %28, %cst_13 [1] : vector<8x8xf32> to vector<8xf32>
    %30 = vector.shape_cast %29 : vector<8xf32> to vector<8x1xf32>
    %31 = vector.broadcast %30 : vector<8x1xf32> to vector<8x8xf32>
    %32 = arith.subf %28, %31 : vector<8x8xf32>
    %33 = math.exp %32 : vector<8x8xf32>
    %cst_14 = arith.constant dense<0.000000e+00> : vector<8xf32>
    %34 = vector.multi_reduction <add>, %33, %cst_14 [1] : vector<8x8xf32> to vector<8xf32>
    %35 = vector.shape_cast %34 : vector<8xf32> to vector<8x1xf32>
    %36 = tpu.reciprocal %35 {approx = true} : vector<8x1xf32> -> vector<8x1xf32>
    %37 = vector.broadcast %36 : vector<8x1xf32> to vector<8x8xf32>
    %38 = arith.mulf %33, %37 : vector<8x8xf32>
    %cst_15 = arith.constant dense<0.000000e+00> : vector<8x8xf32>
    %39 = tpu.matmul %38, %26, %cst_15 {dimension_numbers = #tpu.dot_dimension_numbers<[1], [0], [0], [1], [0, 0, 1, 1], [], []>} : vector<8x8xf32>, vector<8x8xf32>, vector<8x8xf32> -> vector<8x8xf32>
    %40 = vector.extract_strided_slice %3 {offsets = [0, 16], sizes = [8, 8], strides = [1, 1]} : vector<8x32xf32> to vector<8x8xf32>
    %41 = vector.extract_strided_slice %5 {offsets = [0, 16], sizes = [8, 8], strides = [1, 1]} : vector<8x32xf32> to vector<8x8xf32>
    %42 = vector.extract_strided_slice %7 {offsets = [0, 16], sizes = [8, 8], strides = [1, 1]} : vector<8x32xf32> to vector<8x8xf32>
    %43 = tpu.transpose %41, [1, 0] : vector<8x8xf32> -> vector<8x8xf32>
    %cst_16 = arith.constant dense<0.000000e+00> : vector<8x8xf32>
    %44 = tpu.matmul %40, %43, %cst_16 {dimension_numbers = #tpu.dot_dimension_numbers<[1], [0], [0], [1], [0, 0, 1, 1], [], []>} : vector<8x8xf32>, vector<8x8xf32>, vector<8x8xf32> -> vector<8x8xf32>
    %cst_17 = arith.constant dense<0xFF800000> : vector<8xf32>
    %45 = vector.multi_reduction <maximumf>, %44, %cst_17 [1] : vector<8x8xf32> to vector<8xf32>
    %46 = vector.shape_cast %45 : vector<8xf32> to vector<8x1xf32>
    %47 = vector.broadcast %46 : vector<8x1xf32> to vector<8x8xf32>
    %48 = arith.subf %44, %47 : vector<8x8xf32>
    %49 = math.exp %48 : vector<8x8xf32>
    %cst_18 = arith.constant dense<0.000000e+00> : vector<8xf32>
    %50 = vector.multi_reduction <add>, %49, %cst_18 [1] : vector<8x8xf32> to vector<8xf32>
    %51 = vector.shape_cast %50 : vector<8xf32> to vector<8x1xf32>
    %52 = tpu.reciprocal %51 {approx = true} : vector<8x1xf32> -> vector<8x1xf32>
    %53 = vector.broadcast %52 : vector<8x1xf32> to vector<8x8xf32>
    %54 = arith.mulf %49, %53 : vector<8x8xf32>
    %cst_19 = arith.constant dense<0.000000e+00> : vector<8x8xf32>
    %55 = tpu.matmul %54, %42, %cst_19 {dimension_numbers = #tpu.dot_dimension_numbers<[1], [0], [0], [1], [0, 0, 1, 1], [], []>} : vector<8x8xf32>, vector<8x8xf32>, vector<8x8xf32> -> vector<8x8xf32>
    %56 = vector.extract_strided_slice %3 {offsets = [0, 24], sizes = [8, 8], strides = [1, 1]} : vector<8x32xf32> to vector<8x8xf32>
    %57 = vector.extract_strided_slice %5 {offsets = [0, 24], sizes = [8, 8], strides = [1, 1]} : vector<8x32xf32> to vector<8x8xf32>
    %58 = vector.extract_strided_slice %7 {offsets = [0, 24], sizes = [8, 8], strides = [1, 1]} : vector<8x32xf32> to vector<8x8xf32>
    %59 = tpu.transpose %57, [1, 0] : vector<8x8xf32> -> vector<8x8xf32>
    %cst_20 = arith.constant dense<0.000000e+00> : vector<8x8xf32>
    %60 = tpu.matmul %56, %59, %cst_20 {dimension_numbers = #tpu.dot_dimension_numbers<[1], [0], [0], [1], [0, 0, 1, 1], [], []>} : vector<8x8xf32>, vector<8x8xf32>, vector<8x8xf32> -> vector<8x8xf32>
    %cst_21 = arith.constant dense<0xFF800000> : vector<8xf32>
    %61 = vector.multi_reduction <maximumf>, %60, %cst_21 [1] : vector<8x8xf32> to vector<8xf32>
    %62 = vector.shape_cast %61 : vector<8xf32> to vector<8x1xf32>
    %63 = vector.broadcast %62 : vector<8x1xf32> to vector<8x8xf32>
    %64 = arith.subf %60, %63 : vector<8x8xf32>
    %65 = math.exp %64 : vector<8x8xf32>
    %cst_22 = arith.constant dense<0.000000e+00> : vector<8xf32>
    %66 = vector.multi_reduction <add>, %65, %cst_22 [1] : vector<8x8xf32> to vector<8xf32>
    %67 = vector.shape_cast %66 : vector<8xf32> to vector<8x1xf32>
    %68 = tpu.reciprocal %67 {approx = true} : vector<8x1xf32> -> vector<8x1xf32>
    %69 = vector.broadcast %68 : vector<8x1xf32> to vector<8x8xf32>
    %70 = arith.mulf %65, %69 : vector<8x8xf32>
    %cst_23 = arith.constant dense<0.000000e+00> : vector<8x8xf32>
    %71 = tpu.matmul %70, %58, %cst_23 {dimension_numbers = #tpu.dot_dimension_numbers<[1], [0], [0], [1], [0, 0, 1, 1], [], []>} : vector<8x8xf32>, vector<8x8xf32>, vector<8x8xf32> -> vector<8x8xf32>
    %72 = tpu.concatenate %23, %39, %55, %71 in 1 : vector<8x8xf32>, vector<8x8xf32>, vector<8x8xf32>, vector<8x8xf32> -> vector<8x32xf32>
    %c0_24 = arith.constant 0 : index
    %c0_25 = arith.constant 0 : index
    %c0_26 = arith.constant 0 : index
    %73 = vector.load %arg4[%c0_24, %c0_25, %c0_26] : memref<1x8x32xf32, #tpu.memory_space<vmem>>, vector<1x8x32xf32>
    %74 = vector.shape_cast %73 : vector<1x8x32xf32> to vector<8x32xf32>
    %75 = vector.shape_cast %72 : vector<8x32xf32> to vector<1x8x32xf32>
    tpu.vector_store %arg4[%c0_24, %c0_25, %c0_26], %75 {strides = array<i32>} : memref<1x8x32xf32, #tpu.memory_space<vmem>>, vector<1x8x32xf32>,
    return
  }
  func.func @transform_0(%arg0: i32) -> (i32, i32, i32) {
    %c0_i32 = arith.constant 0 : i32
    %c0_i32_0 = arith.constant 0 : i32
    %c0_i32_1 = arith.constant 0 : i32
    return %arg0, %c0_i32, %c0_i32_0 : i32, i32, i32
  }
  func.func @transform_1(%arg0: i32) -> (i32, i32, i32) {
    %c0_i32 = arith.constant 0 : i32
    %c0_i32_0 = arith.constant 0 : i32
    %c0_i32_1 = arith.constant 0 : i32
    return %arg0, %c0_i32, %c0_i32_0 : i32, i32, i32
  }
  func.func @transform_2(%arg0: i32) -> (i32, i32, i32) {
    %c0_i32 = arith.constant 0 : i32
    %c0_i32_0 = arith.constant 0 : i32
    %c0_i32_1 = arith.constant 0 : i32
    return %arg0, %c0_i32, %c0_i32_0 : i32, i32, i32
  }
  func.func @transform_3(%arg0: i32) -> (i32, i32, i32) {
    %c0_i32 = arith.constant 0 : i32
    %c0_i32_0 = arith.constant 0 : i32
    %c0_i32_1 = arith.constant 0 : i32
    return %arg0, %c0_i32, %c0_i32_0 : i32, i32, i32
  }
}

module attributes {stable_mosaic.version = 11 : i64} {
  func.func @_linear_res_ln_kernel(%arg0: i32, %arg1: i32, %arg2: memref<16x32xf32, #tpu.memory_space<vmem>>, %arg3: memref<32x32xf32, #tpu.memory_space<vmem>>, %arg4: memref<1x32xf32, #tpu.memory_space<vmem>>, %arg5: memref<16x32xf32, #tpu.memory_space<vmem>>, %arg6: memref<1x32xf32, #tpu.memory_space<vmem>>, %arg7: memref<1x32xf32, #tpu.memory_space<vmem>>, %arg8: memref<16x32xf32, #tpu.memory_space<vmem>>, %arg9: memref<16x32xf32, #tpu.memory_space<vmem>>) attributes {dimension_semantics = [#tpu.dimension_semantics<parallel>, #tpu.dimension_semantics<arbitrary>], iteration_bounds = array<i64: 1, 1>, scalar_prefetch = 0 : i64, scratch_operands = 1 : i64, tpu.core_type = #tpu.core_type<tc>, window_params = [{transform_indices = @transform_0, window_bounds = array<i64: 16, 32>}, {transform_indices = @transform_1, window_bounds = array<i64: 32, 32>}, {pipeline_mode = #tpu.pipeline_mode<synchronous>, transform_indices = @transform_2, window_bounds = array<i64: 1, 32>}, {transform_indices = @transform_3, window_bounds = array<i64: 16, 32>}, {pipeline_mode = #tpu.pipeline_mode<synchronous>, transform_indices = @transform_4, window_bounds = array<i64: 1, 32>}, {pipeline_mode = #tpu.pipeline_mode<synchronous>, transform_indices = @transform_5, window_bounds = array<i64: 1, 32>}, {transform_indices = @transform_6, window_bounds = array<i64: 16, 32>}]} {
    %c0_i32 = arith.constant 0 : i32
    %0 = arith.cmpi eq, %arg1, %c0_i32 : i32
    %1 = arith.extui %0 : i1 to i32
    %c0_i32_0 = arith.constant 0 : i32
    %2 = arith.cmpi ne, %1, %c0_i32_0 : i32
    scf.if %2 {
      %cst_10 = arith.constant 0.000000e+00 : f32
      %12 = vector.broadcast %cst_10 : f32 to vector<16x32xf32>
      %c0_11 = arith.constant 0 : index
      %c0_12 = arith.constant 0 : index
      %13 = vector.load %arg9[%c0_11, %c0_12] : memref<16x32xf32, #tpu.memory_space<vmem>>, vector<16x32xf32>
      tpu.vector_store %arg9[%c0_11, %c0_12], %12 {strides = array<i32>} : memref<16x32xf32, #tpu.memory_space<vmem>>, vector<16x32xf32>,
    } else {
    }
    %c0 = arith.constant 0 : index
    %c0_1 = arith.constant 0 : index
    %3 = vector.load %arg9[%c0, %c0_1] : memref<16x32xf32, #tpu.memory_space<vmem>>, vector<16x32xf32>
    %c0_2 = arith.constant 0 : index
    %c0_3 = arith.constant 0 : index
    %4 = vector.load %arg2[%c0_2, %c0_3] : memref<16x32xf32, #tpu.memory_space<vmem>>, vector<16x32xf32>
    %c0_4 = arith.constant 0 : index
    %c0_5 = arith.constant 0 : index
    %5 = vector.load %arg3[%c0_4, %c0_5] : memref<32x32xf32, #tpu.memory_space<vmem>>, vector<32x32xf32>
    %cst = arith.constant dense<0.000000e+00> : vector<16x32xf32>
    %6 = tpu.matmul %4, %5, %cst {dimension_numbers = #tpu.dot_dimension_numbers<[1], [0], [0], [1], [0, 0, 1, 1], [], []>} : vector<16x32xf32>, vector<32x32xf32>, vector<16x32xf32> -> vector<16x32xf32>
    %7 = arith.addf %3, %6 : vector<16x32xf32>
    %c0_6 = arith.constant 0 : index
    %c0_7 = arith.constant 0 : index
    %8 = vector.load %arg9[%c0_6, %c0_7] : memref<16x32xf32, #tpu.memory_space<vmem>>, vector<16x32xf32>
    tpu.vector_store %arg9[%c0_6, %c0_7], %7 {strides = array<i32>} : memref<16x32xf32, #tpu.memory_space<vmem>>, vector<16x32xf32>,
    %c0_i32_8 = arith.constant 0 : i32
    %9 = arith.cmpi eq, %arg1, %c0_i32_8 : i32
    %10 = arith.extui %9 : i1 to i32
    %c0_i32_9 = arith.constant 0 : i32
    %11 = arith.cmpi ne, %10, %c0_i32_9 : i32
    scf.if %11 {
      %c0_10 = arith.constant 0 : index
      %c0_11 = arith.constant 0 : index
      %12 = vector.load %arg9[%c0_10, %c0_11] : memref<16x32xf32, #tpu.memory_space<vmem>>, vector<16x32xf32>
      %c0_12 = arith.constant 0 : index
      %c0_13 = arith.constant 0 : index
      %13 = vector.load %arg4[%c0_12, %c0_13] : memref<1x32xf32, #tpu.memory_space<vmem>>, vector<1x32xf32>
      %14 = vector.broadcast %13 : vector<1x32xf32> to vector<16x32xf32>
      %15 = arith.addf %12, %14 : vector<16x32xf32>
      %c0_14 = arith.constant 0 : index
      %c0_15 = arith.constant 0 : index
      %16 = vector.load %arg5[%c0_14, %c0_15] : memref<16x32xf32, #tpu.memory_space<vmem>>, vector<16x32xf32>
      %17 = arith.addf %15, %16 : vector<16x32xf32>
      %cst_16 = arith.constant dense<0.000000e+00> : vector<16xf32>
      %18 = vector.multi_reduction <add>, %17, %cst_16 [1] : vector<16x32xf32> to vector<16xf32>
      %19 = vector.shape_cast %18 : vector<16xf32> to vector<16x1xf32>
      %cst_17 = arith.constant 3.200000e+01 : f32
      %20 = vector.broadcast %cst_17 : f32 to vector<16x1xf32>
      %21 = arith.divf %19, %20 : vector<16x1xf32>
      %22 = vector.broadcast %21 : vector<16x1xf32> to vector<16x32xf32>
      %23 = arith.subf %17, %22 : vector<16x32xf32>
      %24 = arith.mulf %23, %23 : vector<16x32xf32>
      %cst_18 = arith.constant dense<0.000000e+00> : vector<16xf32>
      %25 = vector.multi_reduction <add>, %24, %cst_18 [1] : vector<16x32xf32> to vector<16xf32>
      %26 = vector.shape_cast %25 : vector<16xf32> to vector<16x1xf32>
      %cst_19 = arith.constant 3.200000e+01 : f32
      %27 = vector.broadcast %cst_19 : f32 to vector<16x1xf32>
      %28 = arith.divf %26, %27 : vector<16x1xf32>
      %cst_20 = arith.constant 9.99999974E-6 : f32
      %29 = vector.broadcast %cst_20 : f32 to vector<16x1xf32>
      %30 = arith.addf %28, %29 : vector<16x1xf32>
      %31 = math.rsqrt %30 : vector<16x1xf32>
      %32 = vector.broadcast %31 : vector<16x1xf32> to vector<16x32xf32>
      %33 = arith.mulf %23, %32 : vector<16x32xf32>
      %c0_21 = arith.constant 0 : index
      %c0_22 = arith.constant 0 : index
      %34 = vector.load %arg6[%c0_21, %c0_22] : memref<1x32xf32, #tpu.memory_space<vmem>>, vector<1x32xf32>
      %35 = vector.broadcast %34 : vector<1x32xf32> to vector<16x32xf32>
      %36 = arith.mulf %33, %35 : vector<16x32xf32>
      %c0_23 = arith.constant 0 : index
      %c0_24 = arith.constant 0 : index
      %37 = vector.load %arg7[%c0_23, %c0_24] : memref<1x32xf32, #tpu.memory_space<vmem>>, vector<1x32xf32>
      %38 = vector.broadcast %37 : vector<1x32xf32> to vector<16x32xf32>
      %39 = arith.addf %36, %38 : vector<16x32xf32>
      %c0_25 = arith.constant 0 : index
      %c0_26 = arith.constant 0 : index
      %40 = vector.load %arg8[%c0_25, %c0_26] : memref<16x32xf32, #tpu.memory_space<vmem>>, vector<16x32xf32>
      tpu.vector_store %arg8[%c0_25, %c0_26], %39 {strides = array<i32>} : memref<16x32xf32, #tpu.memory_space<vmem>>, vector<16x32xf32>,
    } else {
    }
    return
  }
  func.func @transform_0(%arg0: i32, %arg1: i32) -> (i32, i32) {
    %c0_i32 = arith.constant 0 : i32
    return %arg0, %arg1 : i32, i32
  }
  func.func @transform_1(%arg0: i32, %arg1: i32) -> (i32, i32) {
    %c0_i32 = arith.constant 0 : i32
    %c0_i32_0 = arith.constant 0 : i32
    return %arg1, %c0_i32 : i32, i32
  }
  func.func @transform_2(%arg0: i32, %arg1: i32) -> (i32, i32) {
    %c0_i32 = arith.constant 0 : i32
    %c0_i32_0 = arith.constant 0 : i32
    %c0_i32_1 = arith.constant 0 : i32
    return %c0_i32, %c0_i32_0 : i32, i32
  }
  func.func @transform_3(%arg0: i32, %arg1: i32) -> (i32, i32) {
    %c0_i32 = arith.constant 0 : i32
    %c0_i32_0 = arith.constant 0 : i32
    return %arg0, %c0_i32 : i32, i32
  }
  func.func @transform_4(%arg0: i32, %arg1: i32) -> (i32, i32) {
    %c0_i32 = arith.constant 0 : i32
    %c0_i32_0 = arith.constant 0 : i32
    %c0_i32_1 = arith.constant 0 : i32
    return %c0_i32, %c0_i32_0 : i32, i32
  }
  func.func @transform_5(%arg0: i32, %arg1: i32) -> (i32, i32) {
    %c0_i32 = arith.constant 0 : i32
    %c0_i32_0 = arith.constant 0 : i32
    %c0_i32_1 = arith.constant 0 : i32
    return %c0_i32, %c0_i32_0 : i32, i32
  }
  func.func @transform_6(%arg0: i32, %arg1: i32) -> (i32, i32) {
    %c0_i32 = arith.constant 0 : i32
    %c0_i32_0 = arith.constant 0 : i32
    return %arg0, %c0_i32 : i32, i32
  }
}

module attributes {stable_mosaic.version = 11 : i64} {
  func.func @_matmul_kernel(%arg0: i32, %arg1: i32, %arg2: i32, %arg3: memref<16x32xf32, #tpu.memory_space<vmem>>, %arg4: memref<32x128xf32, #tpu.memory_space<vmem>>, %arg5: memref<16x128xf32, #tpu.memory_space<vmem>>, %arg6: memref<16x128xf32, #tpu.memory_space<vmem>>) attributes {dimension_semantics = [#tpu.dimension_semantics<parallel>, #tpu.dimension_semantics<parallel>, #tpu.dimension_semantics<arbitrary>], iteration_bounds = array<i64: 1, 1, 1>, scalar_prefetch = 0 : i64, scratch_operands = 1 : i64, tpu.core_type = #tpu.core_type<tc>, window_params = [{transform_indices = @transform_0, window_bounds = array<i64: 16, 32>}, {transform_indices = @transform_1, window_bounds = array<i64: 32, 128>}, {transform_indices = @transform_2, window_bounds = array<i64: 16, 128>}]} {
    %c0_i32 = arith.constant 0 : i32
    %0 = arith.cmpi eq, %arg2, %c0_i32 : i32
    %1 = arith.extui %0 : i1 to i32
    %c0_i32_0 = arith.constant 0 : i32
    %2 = arith.cmpi ne, %1, %c0_i32_0 : i32
    scf.if %2 {
      %cst_10 = arith.constant 0.000000e+00 : f32
      %12 = vector.broadcast %cst_10 : f32 to vector<16x128xf32>
      %c0_11 = arith.constant 0 : index
      %c0_12 = arith.constant 0 : index
      %13 = vector.load %arg6[%c0_11, %c0_12] : memref<16x128xf32, #tpu.memory_space<vmem>>, vector<16x128xf32>
      tpu.vector_store %arg6[%c0_11, %c0_12], %12 {strides = array<i32>} : memref<16x128xf32, #tpu.memory_space<vmem>>, vector<16x128xf32>,
    } else {
    }
    %c0 = arith.constant 0 : index
    %c0_1 = arith.constant 0 : index
    %3 = vector.load %arg6[%c0, %c0_1] : memref<16x128xf32, #tpu.memory_space<vmem>>, vector<16x128xf32>
    %c0_2 = arith.constant 0 : index
    %c0_3 = arith.constant 0 : index
    %4 = vector.load %arg3[%c0_2, %c0_3] : memref<16x32xf32, #tpu.memory_space<vmem>>, vector<16x32xf32>
    %c0_4 = arith.constant 0 : index
    %c0_5 = arith.constant 0 : index
    %5 = vector.load %arg4[%c0_4, %c0_5] : memref<32x128xf32, #tpu.memory_space<vmem>>, vector<32x128xf32>
    %cst = arith.constant dense<0.000000e+00> : vector<16x128xf32>
    %6 = tpu.matmul %4, %5, %cst {dimension_numbers = #tpu.dot_dimension_numbers<[1], [0], [0], [1], [0, 0, 1, 1], [], []>} : vector<16x32xf32>, vector<32x128xf32>, vector<16x128xf32> -> vector<16x128xf32>
    %7 = arith.addf %3, %6 : vector<16x128xf32>
    %c0_6 = arith.constant 0 : index
    %c0_7 = arith.constant 0 : index
    %8 = vector.load %arg6[%c0_6, %c0_7] : memref<16x128xf32, #tpu.memory_space<vmem>>, vector<16x128xf32>
    tpu.vector_store %arg6[%c0_6, %c0_7], %7 {strides = array<i32>} : memref<16x128xf32, #tpu.memory_space<vmem>>, vector<16x128xf32>,
    %c0_i32_8 = arith.constant 0 : i32
    %9 = arith.cmpi eq, %arg2, %c0_i32_8 : i32
    %10 = arith.extui %9 : i1 to i32
    %c0_i32_9 = arith.constant 0 : i32
    %11 = arith.cmpi ne, %10, %c0_i32_9 : i32
    scf.if %11 {
      %c0_10 = arith.constant 0 : index
      %c0_11 = arith.constant 0 : index
      %12 = vector.load %arg6[%c0_10, %c0_11] : memref<16x128xf32, #tpu.memory_space<vmem>>, vector<16x128xf32>
      %c0_12 = arith.constant 0 : index
      %c0_13 = arith.constant 0 : index
      %13 = vector.load %arg5[%c0_12, %c0_13] : memref<16x128xf32, #tpu.memory_space<vmem>>, vector<16x128xf32>
      tpu.vector_store %arg5[%c0_12, %c0_13], %12 {strides = array<i32>} : memref<16x128xf32, #tpu.memory_space<vmem>>, vector<16x128xf32>,
    } else {
    }
    return
  }
  func.func @transform_0(%arg0: i32, %arg1: i32, %arg2: i32) -> (i32, i32) {
    %c0_i32 = arith.constant 0 : i32
    return %arg0, %arg2 : i32, i32
  }
  func.func @transform_1(%arg0: i32, %arg1: i32, %arg2: i32) -> (i32, i32) {
    %c0_i32 = arith.constant 0 : i32
    return %arg2, %arg1 : i32, i32
  }
  func.func @transform_2(%arg0: i32, %arg1: i32, %arg2: i32) -> (i32, i32) {
    %c0_i32 = arith.constant 0 : i32
    return %arg0, %arg1 : i32, i32
  }
}

module attributes {stable_mosaic.version = 11 : i64} {
  func.func @_matmul_kernel(%arg0: i32, %arg1: i32, %arg2: i32, %arg3: memref<16x32xf32, #tpu.memory_space<vmem>>, %arg4: memref<32x128xf32, #tpu.memory_space<vmem>>, %arg5: memref<1x128xf32, #tpu.memory_space<vmem>>, %arg6: memref<16x128xf32, #tpu.memory_space<vmem>>, %arg7: memref<16x128xf32, #tpu.memory_space<vmem>>) attributes {dimension_semantics = [#tpu.dimension_semantics<parallel>, #tpu.dimension_semantics<parallel>, #tpu.dimension_semantics<arbitrary>], iteration_bounds = array<i64: 1, 1, 1>, scalar_prefetch = 0 : i64, scratch_operands = 1 : i64, tpu.core_type = #tpu.core_type<tc>, window_params = [{transform_indices = @transform_0, window_bounds = array<i64: 16, 32>}, {transform_indices = @transform_1, window_bounds = array<i64: 32, 128>}, {transform_indices = @transform_2, window_bounds = array<i64: 1, 128>}, {transform_indices = @transform_3, window_bounds = array<i64: 16, 128>}]} {
    %c0_i32 = arith.constant 0 : i32
    %0 = arith.cmpi eq, %arg2, %c0_i32 : i32
    %1 = arith.extui %0 : i1 to i32
    %c0_i32_0 = arith.constant 0 : i32
    %2 = arith.cmpi ne, %1, %c0_i32_0 : i32
    scf.if %2 {
      %cst_10 = arith.constant 0.000000e+00 : f32
      %12 = vector.broadcast %cst_10 : f32 to vector<16x128xf32>
      %c0_11 = arith.constant 0 : index
      %c0_12 = arith.constant 0 : index
      %13 = vector.load %arg7[%c0_11, %c0_12] : memref<16x128xf32, #tpu.memory_space<vmem>>, vector<16x128xf32>
      tpu.vector_store %arg7[%c0_11, %c0_12], %12 {strides = array<i32>} : memref<16x128xf32, #tpu.memory_space<vmem>>, vector<16x128xf32>,
    } else {
    }
    %c0 = arith.constant 0 : index
    %c0_1 = arith.constant 0 : index
    %3 = vector.load %arg7[%c0, %c0_1] : memref<16x128xf32, #tpu.memory_space<vmem>>, vector<16x128xf32>
    %c0_2 = arith.constant 0 : index
    %c0_3 = arith.constant 0 : index
    %4 = vector.load %arg3[%c0_2, %c0_3] : memref<16x32xf32, #tpu.memory_space<vmem>>, vector<16x32xf32>
    %c0_4 = arith.constant 0 : index
    %c0_5 = arith.constant 0 : index
    %5 = vector.load %arg4[%c0_4, %c0_5] : memref<32x128xf32, #tpu.memory_space<vmem>>, vector<32x128xf32>
    %cst = arith.constant dense<0.000000e+00> : vector<16x128xf32>
    %6 = tpu.matmul %4, %5, %cst {dimension_numbers = #tpu.dot_dimension_numbers<[1], [0], [0], [1], [0, 0, 1, 1], [], []>} : vector<16x32xf32>, vector<32x128xf32>, vector<16x128xf32> -> vector<16x128xf32>
    %7 = arith.addf %3, %6 : vector<16x128xf32>
    %c0_6 = arith.constant 0 : index
    %c0_7 = arith.constant 0 : index
    %8 = vector.load %arg7[%c0_6, %c0_7] : memref<16x128xf32, #tpu.memory_space<vmem>>, vector<16x128xf32>
    tpu.vector_store %arg7[%c0_6, %c0_7], %7 {strides = array<i32>} : memref<16x128xf32, #tpu.memory_space<vmem>>, vector<16x128xf32>,
    %c0_i32_8 = arith.constant 0 : i32
    %9 = arith.cmpi eq, %arg2, %c0_i32_8 : i32
    %10 = arith.extui %9 : i1 to i32
    %c0_i32_9 = arith.constant 0 : i32
    %11 = arith.cmpi ne, %10, %c0_i32_9 : i32
    scf.if %11 {
      %c0_10 = arith.constant 0 : index
      %c0_11 = arith.constant 0 : index
      %12 = vector.load %arg7[%c0_10, %c0_11] : memref<16x128xf32, #tpu.memory_space<vmem>>, vector<16x128xf32>
      %c0_12 = arith.constant 0 : index
      %c0_13 = arith.constant 0 : index
      %13 = vector.load %arg5[%c0_12, %c0_13] : memref<1x128xf32, #tpu.memory_space<vmem>>, vector<1x128xf32>
      %14 = vector.broadcast %13 : vector<1x128xf32> to vector<16x128xf32>
      %15 = arith.addf %12, %14 : vector<16x128xf32>
      %cst_14 = arith.constant 0.000000e+00 : f32
      %16 = vector.broadcast %cst_14 : f32 to vector<16x128xf32>
      %17 = arith.maximumf %15, %16 : vector<16x128xf32>
      %c0_15 = arith.constant 0 : index
      %c0_16 = arith.constant 0 : index
      %18 = vector.load %arg6[%c0_15, %c0_16] : memref<16x128xf32, #tpu.memory_space<vmem>>, vector<16x128xf32>
      tpu.vector_store %arg6[%c0_15, %c0_16], %17 {strides = array<i32>} : memref<16x128xf32, #tpu.memory_space<vmem>>, vector<16x128xf32>,
    } else {
    }
    return
  }
  func.func @transform_0(%arg0: i32, %arg1: i32, %arg2: i32) -> (i32, i32) {
    %c0_i32 = arith.constant 0 : i32
    return %arg0, %arg2 : i32, i32
  }
  func.func @transform_1(%arg0: i32, %arg1: i32, %arg2: i32) -> (i32, i32) {
    %c0_i32 = arith.constant 0 : i32
    return %arg2, %arg1 : i32, i32
  }
  func.func @transform_2(%arg0: i32, %arg1: i32, %arg2: i32) -> (i32, i32) {
    %c0_i32 = arith.constant 0 : i32
    %c0_i32_0 = arith.constant 0 : i32
    return %c0_i32, %arg1 : i32, i32
  }
  func.func @transform_3(%arg0: i32, %arg1: i32, %arg2: i32) -> (i32, i32) {
    %c0_i32 = arith.constant 0 : i32
    return %arg0, %arg1 : i32, i32
  }
}

module attributes {stable_mosaic.version = 11 : i64} {
  func.func @_linear_res_ln_kernel(%arg0: i32, %arg1: i32, %arg2: memref<16x128xf32, #tpu.memory_space<vmem>>, %arg3: memref<128x32xf32, #tpu.memory_space<vmem>>, %arg4: memref<1x32xf32, #tpu.memory_space<vmem>>, %arg5: memref<16x32xf32, #tpu.memory_space<vmem>>, %arg6: memref<1x32xf32, #tpu.memory_space<vmem>>, %arg7: memref<1x32xf32, #tpu.memory_space<vmem>>, %arg8: memref<16x32xf32, #tpu.memory_space<vmem>>, %arg9: memref<16x32xf32, #tpu.memory_space<vmem>>) attributes {dimension_semantics = [#tpu.dimension_semantics<parallel>, #tpu.dimension_semantics<arbitrary>], iteration_bounds = array<i64: 1, 1>, scalar_prefetch = 0 : i64, scratch_operands = 1 : i64, tpu.core_type = #tpu.core_type<tc>, window_params = [{transform_indices = @transform_0, window_bounds = array<i64: 16, 128>}, {transform_indices = @transform_1, window_bounds = array<i64: 128, 32>}, {pipeline_mode = #tpu.pipeline_mode<synchronous>, transform_indices = @transform_2, window_bounds = array<i64: 1, 32>}, {transform_indices = @transform_3, window_bounds = array<i64: 16, 32>}, {pipeline_mode = #tpu.pipeline_mode<synchronous>, transform_indices = @transform_4, window_bounds = array<i64: 1, 32>}, {pipeline_mode = #tpu.pipeline_mode<synchronous>, transform_indices = @transform_5, window_bounds = array<i64: 1, 32>}, {transform_indices = @transform_6, window_bounds = array<i64: 16, 32>}]} {
    %c0_i32 = arith.constant 0 : i32
    %0 = arith.cmpi eq, %arg1, %c0_i32 : i32
    %1 = arith.extui %0 : i1 to i32
    %c0_i32_0 = arith.constant 0 : i32
    %2 = arith.cmpi ne, %1, %c0_i32_0 : i32
    scf.if %2 {
      %cst_10 = arith.constant 0.000000e+00 : f32
      %12 = vector.broadcast %cst_10 : f32 to vector<16x32xf32>
      %c0_11 = arith.constant 0 : index
      %c0_12 = arith.constant 0 : index
      %13 = vector.load %arg9[%c0_11, %c0_12] : memref<16x32xf32, #tpu.memory_space<vmem>>, vector<16x32xf32>
      tpu.vector_store %arg9[%c0_11, %c0_12], %12 {strides = array<i32>} : memref<16x32xf32, #tpu.memory_space<vmem>>, vector<16x32xf32>,
    } else {
    }
    %c0 = arith.constant 0 : index
    %c0_1 = arith.constant 0 : index
    %3 = vector.load %arg9[%c0, %c0_1] : memref<16x32xf32, #tpu.memory_space<vmem>>, vector<16x32xf32>
    %c0_2 = arith.constant 0 : index
    %c0_3 = arith.constant 0 : index
    %4 = vector.load %arg2[%c0_2, %c0_3] : memref<16x128xf32, #tpu.memory_space<vmem>>, vector<16x128xf32>
    %c0_4 = arith.constant 0 : index
    %c0_5 = arith.constant 0 : index
    %5 = vector.load %arg3[%c0_4, %c0_5] : memref<128x32xf32, #tpu.memory_space<vmem>>, vector<128x32xf32>
    %cst = arith.constant dense<0.000000e+00> : vector<16x32xf32>
    %6 = tpu.matmul %4, %5, %cst {dimension_numbers = #tpu.dot_dimension_numbers<[1], [0], [0], [1], [0, 0, 1, 1], [], []>} : vector<16x128xf32>, vector<128x32xf32>, vector<16x32xf32> -> vector<16x32xf32>
    %7 = arith.addf %3, %6 : vector<16x32xf32>
    %c0_6 = arith.constant 0 : index
    %c0_7 = arith.constant 0 : index
    %8 = vector.load %arg9[%c0_6, %c0_7] : memref<16x32xf32, #tpu.memory_space<vmem>>, vector<16x32xf32>
    tpu.vector_store %arg9[%c0_6, %c0_7], %7 {strides = array<i32>} : memref<16x32xf32, #tpu.memory_space<vmem>>, vector<16x32xf32>,
    %c0_i32_8 = arith.constant 0 : i32
    %9 = arith.cmpi eq, %arg1, %c0_i32_8 : i32
    %10 = arith.extui %9 : i1 to i32
    %c0_i32_9 = arith.constant 0 : i32
    %11 = arith.cmpi ne, %10, %c0_i32_9 : i32
    scf.if %11 {
      %c0_10 = arith.constant 0 : index
      %c0_11 = arith.constant 0 : index
      %12 = vector.load %arg9[%c0_10, %c0_11] : memref<16x32xf32, #tpu.memory_space<vmem>>, vector<16x32xf32>
      %c0_12 = arith.constant 0 : index
      %c0_13 = arith.constant 0 : index
      %13 = vector.load %arg4[%c0_12, %c0_13] : memref<1x32xf32, #tpu.memory_space<vmem>>, vector<1x32xf32>
      %14 = vector.broadcast %13 : vector<1x32xf32> to vector<16x32xf32>
      %15 = arith.addf %12, %14 : vector<16x32xf32>
      %c0_14 = arith.constant 0 : index
      %c0_15 = arith.constant 0 : index
      %16 = vector.load %arg5[%c0_14, %c0_15] : memref<16x32xf32, #tpu.memory_space<vmem>>, vector<16x32xf32>
      %17 = arith.addf %15, %16 : vector<16x32xf32>
      %cst_16 = arith.constant dense<0.000000e+00> : vector<16xf32>
      %18 = vector.multi_reduction <add>, %17, %cst_16 [1] : vector<16x32xf32> to vector<16xf32>
      %19 = vector.shape_cast %18 : vector<16xf32> to vector<16x1xf32>
      %cst_17 = arith.constant 3.200000e+01 : f32
      %20 = vector.broadcast %cst_17 : f32 to vector<16x1xf32>
      %21 = arith.divf %19, %20 : vector<16x1xf32>
      %22 = vector.broadcast %21 : vector<16x1xf32> to vector<16x32xf32>
      %23 = arith.subf %17, %22 : vector<16x32xf32>
      %24 = arith.mulf %23, %23 : vector<16x32xf32>
      %cst_18 = arith.constant dense<0.000000e+00> : vector<16xf32>
      %25 = vector.multi_reduction <add>, %24, %cst_18 [1] : vector<16x32xf32> to vector<16xf32>
      %26 = vector.shape_cast %25 : vector<16xf32> to vector<16x1xf32>
      %cst_19 = arith.constant 3.200000e+01 : f32
      %27 = vector.broadcast %cst_19 : f32 to vector<16x1xf32>
      %28 = arith.divf %26, %27 : vector<16x1xf32>
      %cst_20 = arith.constant 9.99999974E-6 : f32
      %29 = vector.broadcast %cst_20 : f32 to vector<16x1xf32>
      %30 = arith.addf %28, %29 : vector<16x1xf32>
      %31 = math.rsqrt %30 : vector<16x1xf32>
      %32 = vector.broadcast %31 : vector<16x1xf32> to vector<16x32xf32>
      %33 = arith.mulf %23, %32 : vector<16x32xf32>
      %c0_21 = arith.constant 0 : index
      %c0_22 = arith.constant 0 : index
      %34 = vector.load %arg6[%c0_21, %c0_22] : memref<1x32xf32, #tpu.memory_space<vmem>>, vector<1x32xf32>
      %35 = vector.broadcast %34 : vector<1x32xf32> to vector<16x32xf32>
      %36 = arith.mulf %33, %35 : vector<16x32xf32>
      %c0_23 = arith.constant 0 : index
      %c0_24 = arith.constant 0 : index
      %37 = vector.load %arg7[%c0_23, %c0_24] : memref<1x32xf32, #tpu.memory_space<vmem>>, vector<1x32xf32>
      %38 = vector.broadcast %37 : vector<1x32xf32> to vector<16x32xf32>
      %39 = arith.addf %36, %38 : vector<16x32xf32>
      %c0_25 = arith.constant 0 : index
      %c0_26 = arith.constant 0 : index
      %40 = vector.load %arg8[%c0_25, %c0_26] : memref<16x32xf32, #tpu.memory_space<vmem>>, vector<16x32xf32>
      tpu.vector_store %arg8[%c0_25, %c0_26], %39 {strides = array<i32>} : memref<16x32xf32, #tpu.memory_space<vmem>>, vector<16x32xf32>,
    } else {
    }
    return
  }
  func.func @transform_0(%arg0: i32, %arg1: i32) -> (i32, i32) {
    %c0_i32 = arith.constant 0 : i32
    return %arg0, %arg1 : i32, i32
  }
  func.func @transform_1(%arg0: i32, %arg1: i32) -> (i32, i32) {
    %c0_i32 = arith.constant 0 : i32
    %c0_i32_0 = arith.constant 0 : i32
    return %arg1, %c0_i32 : i32, i32
  }
  func.func @transform_2(%arg0: i32, %arg1: i32) -> (i32, i32) {
    %c0_i32 = arith.constant 0 : i32
    %c0_i32_0 = arith.constant 0 : i32
    %c0_i32_1 = arith.constant 0 : i32
    return %c0_i32, %c0_i32_0 : i32, i32
  }
  func.func @transform_3(%arg0: i32, %arg1: i32) -> (i32, i32) {
    %c0_i32 = arith.constant 0 : i32
    %c0_i32_0 = arith.constant 0 : i32
    return %arg0, %c0_i32 : i32, i32
  }
  func.func @transform_4(%arg0: i32, %arg1: i32) -> (i32, i32) {
    %c0_i32 = arith.constant 0 : i32
    %c0_i32_0 = arith.constant 0 : i32
    %c0_i32_1 = arith.constant 0 : i32
    return %c0_i32, %c0_i32_0 : i32, i32
  }
  func.func @transform_5(%arg0: i32, %arg1: i32) -> (i32, i32) {
    %c0_i32 = arith.constant 0 : i32
    %c0_i32_0 = arith.constant 0 : i32
    %c0_i32_1 = arith.constant 0 : i32
    return %c0_i32, %c0_i32_0 : i32, i32
  }
  func.func @transform_6(%arg0: i32, %arg1: i32) -> (i32, i32) {
    %c0_i32 = arith.constant 0 : i32
    %c0_i32_0 = arith.constant 0 : i32
    return %arg0, %c0_i32 : i32, i32
  }
}

module attributes {stable_mosaic.version = 11 : i64} {
  func.func @_matmul_kernel(%arg0: i32, %arg1: i32, %arg2: i32, %arg3: memref<16x32xf32, #tpu.memory_space<vmem>>, %arg4: memref<32x128xf32, #tpu.memory_space<vmem>>, %arg5: memref<1x128xf32, #tpu.memory_space<vmem>>, %arg6: memref<16x128xf32, #tpu.memory_space<vmem>>, %arg7: memref<16x128xf32, #tpu.memory_space<vmem>>) attributes {dimension_semantics = [#tpu.dimension_semantics<parallel>, #tpu.dimension_semantics<parallel>, #tpu.dimension_semantics<arbitrary>], iteration_bounds = array<i64: 1, 1, 1>, scalar_prefetch = 0 : i64, scratch_operands = 1 : i64, tpu.core_type = #tpu.core_type<tc>, window_params = [{transform_indices = @transform_0, window_bounds = array<i64: 16, 32>}, {transform_indices = @transform_1, window_bounds = array<i64: 32, 128>}, {transform_indices = @transform_2, window_bounds = array<i64: 1, 128>}, {transform_indices = @transform_3, window_bounds = array<i64: 16, 128>}]} {
    %c0_i32 = arith.constant 0 : i32
    %0 = arith.cmpi eq, %arg2, %c0_i32 : i32
    %1 = arith.extui %0 : i1 to i32
    %c0_i32_0 = arith.constant 0 : i32
    %2 = arith.cmpi ne, %1, %c0_i32_0 : i32
    scf.if %2 {
      %cst_10 = arith.constant 0.000000e+00 : f32
      %12 = vector.broadcast %cst_10 : f32 to vector<16x128xf32>
      %c0_11 = arith.constant 0 : index
      %c0_12 = arith.constant 0 : index
      %13 = vector.load %arg7[%c0_11, %c0_12] : memref<16x128xf32, #tpu.memory_space<vmem>>, vector<16x128xf32>
      tpu.vector_store %arg7[%c0_11, %c0_12], %12 {strides = array<i32>} : memref<16x128xf32, #tpu.memory_space<vmem>>, vector<16x128xf32>,
    } else {
    }
    %c0 = arith.constant 0 : index
    %c0_1 = arith.constant 0 : index
    %3 = vector.load %arg7[%c0, %c0_1] : memref<16x128xf32, #tpu.memory_space<vmem>>, vector<16x128xf32>
    %c0_2 = arith.constant 0 : index
    %c0_3 = arith.constant 0 : index
    %4 = vector.load %arg3[%c0_2, %c0_3] : memref<16x32xf32, #tpu.memory_space<vmem>>, vector<16x32xf32>
    %c0_4 = arith.constant 0 : index
    %c0_5 = arith.constant 0 : index
    %5 = vector.load %arg4[%c0_4, %c0_5] : memref<32x128xf32, #tpu.memory_space<vmem>>, vector<32x128xf32>
    %cst = arith.constant dense<0.000000e+00> : vector<16x128xf32>
    %6 = tpu.matmul %4, %5, %cst {dimension_numbers = #tpu.dot_dimension_numbers<[1], [0], [0], [1], [0, 0, 1, 1], [], []>} : vector<16x32xf32>, vector<32x128xf32>, vector<16x128xf32> -> vector<16x128xf32>
    %7 = arith.addf %3, %6 : vector<16x128xf32>
    %c0_6 = arith.constant 0 : index
    %c0_7 = arith.constant 0 : index
    %8 = vector.load %arg7[%c0_6, %c0_7] : memref<16x128xf32, #tpu.memory_space<vmem>>, vector<16x128xf32>
    tpu.vector_store %arg7[%c0_6, %c0_7], %7 {strides = array<i32>} : memref<16x128xf32, #tpu.memory_space<vmem>>, vector<16x128xf32>,
    %c0_i32_8 = arith.constant 0 : i32
    %9 = arith.cmpi eq, %arg2, %c0_i32_8 : i32
    %10 = arith.extui %9 : i1 to i32
    %c0_i32_9 = arith.constant 0 : i32
    %11 = arith.cmpi ne, %10, %c0_i32_9 : i32
    scf.if %11 {
      %c0_10 = arith.constant 0 : index
      %c0_11 = arith.constant 0 : index
      %12 = vector.load %arg7[%c0_10, %c0_11] : memref<16x128xf32, #tpu.memory_space<vmem>>, vector<16x128xf32>
      %c0_12 = arith.constant 0 : index
      %c0_13 = arith.constant 0 : index
      %13 = vector.load %arg5[%c0_12, %c0_13] : memref<1x128xf32, #tpu.memory_space<vmem>>, vector<1x128xf32>
      %14 = vector.broadcast %13 : vector<1x128xf32> to vector<16x128xf32>
      %15 = arith.addf %12, %14 : vector<16x128xf32>
      %c0_14 = arith.constant 0 : index
      %c0_15 = arith.constant 0 : index
      %16 = vector.load %arg6[%c0_14, %c0_15] : memref<16x128xf32, #tpu.memory_space<vmem>>, vector<16x128xf32>
      tpu.vector_store %arg6[%c0_14, %c0_15], %15 {strides = array<i32>} : memref<16x128xf32, #tpu.memory_space<vmem>>, vector<16x128xf32>,
    } else {
    }
    return
  }
  func.func @transform_0(%arg0: i32, %arg1: i32, %arg2: i32) -> (i32, i32) {
    %c0_i32 = arith.constant 0 : i32
    return %arg0, %arg2 : i32, i32
  }
  func.func @transform_1(%arg0: i32, %arg1: i32, %arg2: i32) -> (i32, i32) {
    %c0_i32 = arith.constant 0 : i32
    return %arg2, %arg1 : i32, i32
  }
  func.func @transform_2(%arg0: i32, %arg1: i32, %arg2: i32) -> (i32, i32) {
    %c0_i32 = arith.constant 0 : i32
    %c0_i32_0 = arith.constant 0 : i32
    return %c0_i32, %arg1 : i32, i32
  }
  func.func @transform_3(%arg0: i32, %arg1: i32, %arg2: i32) -> (i32, i32) {
    %c0_i32 = arith.constant 0 : i32
    return %arg0, %arg1 : i32, i32
  }
}

</mosaic_0001>

<llo_original>
// kernel: transformer_forward.31
$region0: #{transformer_forward.31}
  #allocation0 [shape = 'u32[]', space=smem, size = 0x4, offset = 0x4, fixed_abs, tag = 'smem constant byte address 0x4 - core index']
  #allocation1 [shape = 'u32[144,128]{1,0:T(1,128)}', space=vmem, size = 0x12000, scoped, tag = 'internal scratch']
  #allocation2 [shape = 'f32[16,32]{1,0:T(8,128)}', space=vmem, size = 0x2000, scoped, tag = 'scratch operand']
  %s0 = inlined_call_operand.vmem [shape: f32[16,32], index: 0, kind: input, shape index: {}]
  %s1 = inlined_call_operand.vmem [shape: f32[32,32], index: 1, kind: input, shape index: {}]
  %s2 = inlined_call_operand.vmem [shape: f32[1,32], index: 2, kind: input, shape index: {}]
  %s3 = inlined_call_operand.vmem [shape: f32[16,32], index: 3, kind: input, shape index: {}]
  %s4 = inlined_call_operand.vmem [shape: f32[1,32], index: 4, kind: input, shape index: {}]
  %s5 = inlined_call_operand.vmem [shape: f32[1,32], index: 5, kind: input, shape index: {}]
  %s6 = inlined_call_operand.vmem [shape: f32[16,32], index: 6, kind: output, shape index: {}]
  %s7 = sld [smem:[#allocation0]]
  $region42: #{transformer_forward.31} parent=0
    _
  %s9 = ssub.s32 1, %s7
  %s10 = scalar_select 0, %s9, %s7
  // Predicated region
  $region2: #{transformer_forward.31} parent=0 // pred_check
    _
  $region3: #{transformer_forward.31} parent=0 // pred_check_branch
    %12 = sbr.rel (0) target = $region5
  $region4: #{transformer_forward.31} parent=0 // pred_region
    _
  $region5: #{transformer_forward.31} parent=0 // pred_fallthru
    _
  // Predicated region
  $region6: #{transformer_forward.31} parent=0 // pred_check
    _
  $region7: #{transformer_forward.31} parent=0 // pred_check_branch
    %14 = sbr.rel (0) target = $region9
  $region8: #{transformer_forward.31} parent=0 // pred_region
    _
  $region9: #{transformer_forward.31} parent=0 // pred_fallthru
    _
  // Predicated region
  $region10: #{transformer_forward.31} parent=0 // pred_check
    _
  $region11: #{transformer_forward.31} parent=0 // pred_check_branch
    %16 = sbr.rel (0) target = $region13
  $region12: #{transformer_forward.31} parent=0 // pred_region
    _
  $region13: #{transformer_forward.31} parent=0 // pred_fallthru
    _
  // Predicated region
  $region14: #{transformer_forward.31} parent=0 // pred_check
    _
  $region15: #{transformer_forward.31} parent=0 // pred_check_branch
    %18 = sbr.rel (0) target = $region17
  $region16: #{transformer_forward.31} parent=0 // pred_region
    _
  $region17: #{transformer_forward.31} parent=0 // pred_fallthru
    _
  // Predicated region
  $region18: #{transformer_forward.31} parent=0 // pred_check
    _
  $region19: #{transformer_forward.31} parent=0 // pred_check_branch
    %20 = sbr.rel (0) target = $region21
  $region20: #{transformer_forward.31} parent=0 // pred_region
    _
  $region21: #{transformer_forward.31} parent=0 // pred_fallthru
    _
  // Predicated region
  $region22: #{transformer_forward.31} parent=0 // pred_check
    _
  $region23: #{transformer_forward.31} parent=0 // pred_check_branch
    %22 = sbr.rel (0) target = $region25
  $region24: #{transformer_forward.31} parent=0 // pred_region
    _
  $region25: #{transformer_forward.31} parent=0 // pred_fallthru
    _
  %p23 = scmp.eq.s32.totalorder 0, 0
  // Predicated region
  $region26: #{transformer_forward.31} parent=0 // pred_check
    %p24 = pneg %p23
  $region27: #{transformer_forward.31} parent=0 // pred_check_branch
    %26 = sbr.rel (%p24) target = $region29
  $region28: #{transformer_forward.31} parent=0 // pred_region
    %vm27 = vcmask 261120
    %28 = vst.msk [vmem:[#allocation2] sm:$0xff] %vm27, 0.0
    %29 = vst.msk [vmem:[#allocation2 + $0x8] sm:$0xff] %vm27, 0.0
  $region29: #{transformer_forward.31} parent=0 // pred_fallthru
    _
  %v30 = vld [vmem:[#allocation2] sm:$0xff]
  %v31 = vld [vmem:[#allocation2 + $0x8] sm:$0xff]
  %v32 = vld [vmem:[%s0] sm:$0xff]
  %v33 = vld [vmem:[%s0 + $0x8] sm:$0xff]
  %v34 = vld [vmem:[%s1] sm:$0xff]
  %v35 = vld [vmem:[%s1 + $0x8] sm:$0xff]
  %v36 = vld [vmem:[%s1 + $0x10] sm:$0xff]
  %v37 = vld [vmem:[%s1 + $0x18] sm:$0xff]
  %vm38 = vcmask 261120
  %v40 = vsel %vm38, %v32, 0
  %v43 = vsel %vm38, %v33, 0
  %45 = vmatprep.subr.mxu0 0.0
  %46 = vmatpush1.msra.mxu0 0.0
  %47 = vmatprep.subr.mxu0 0.0
  %48 = vmatpush1.msra.mxu0 0.0
  %49 = vmatprep.subr.mxu0 0.0
  %50 = vmatpush1.msra.mxu0 0.0
  %51 = vmatprep.subr.mxu0 0.0
  %52 = vmatpush1.msra.mxu0 0.0
  %53 = vmatprep.subr.mxu0 0.0
  %54 = vmatpush1.msra.mxu0 0.0
  %55 = vmatprep.subr.mxu0 0.0
  %56 = vmatpush1.msra.mxu0 0.0
  %57 = vmatprep.subr.mxu0 0.0
  %58 = vmatpush1.msra.mxu0 0.0
  %59 = vmatprep.subr.mxu0 0.0
  %60 = vmatpush1.msra.mxu0 0.0
  %61 = vmatprep.subr.mxu0 0.0
  %62 = vmatpush1.msra.mxu0 0.0
  %63 = vmatprep.subr.mxu0 0.0
  %64 = vmatpush1.msra.mxu0 0.0
  %65 = vmatprep.subr.mxu0 0.0
  %66 = vmatpush1.msra.mxu0 0.0
  %67 = vmatprep.subr.mxu0 0.0
  %68 = vmatpush1.msra.mxu0 0.0
  %69 = vmatprep.subr.mxu0 0.0
  %70 = vmatpush1.msra.mxu0 %v37
  %71 = vmatprep.subr.mxu0 0.0
  %72 = vmatpush1.msra.mxu0 %v36
  %73 = vmatprep.subr.mxu0 0.0
  %74 = vmatpush1.msra.mxu0 %v35
  %75 = vmatprep.subr.mxu0 0.0
  %76 = vmatpush1.msra.mxu0 %v34
  %77 = vmatprep.subr.mxu0 0.0
  %78 = vmatpush2.msra.mxu0 0.0
  %79 = vmatprep.subr.mxu0 0.0
  %80 = vmatpush2.msra.mxu0 0.0
  %81 = vmatprep.subr.mxu0 0.0
  %82 = vmatpush2.msra.mxu0 0.0
  %83 = vmatprep.subr.mxu0 0.0
  %84 = vmatpush2.msra.mxu0 0.0
  %85 = vmatprep.subr.mxu0 0.0
  %86 = vmatpush2.msra.mxu0 0.0
  %87 = vmatprep.subr.mxu0 0.0
  %88 = vmatpush2.msra.mxu0 0.0
  %89 = vmatprep.subr.mxu0 0.0
  %90 = vmatpush2.msra.mxu0 0.0
  %91 = vmatprep.subr.mxu0 0.0
  %92 = vmatpush2.msra.mxu0 0.0
  %93 = vmatprep.subr.mxu0 0.0
  %94 = vmatpush2.msra.mxu0 0.0
  %95 = vmatprep.subr.mxu0 0.0
  %96 = vmatpush2.msra.mxu0 0.0
  %97 = vmatprep.subr.mxu0 0.0
  %98 = vmatpush2.msra.mxu0 0.0
  %99 = vmatprep.subr.mxu0 0.0
  %100 = vmatpush2.msra.mxu0 0.0
  %101 = vmatprep.subr.mxu0 0.0
  %102 = vmatpush2.msra.mxu0 0.0
  %103 = vmatprep.subr.mxu0 0.0
  %104 = vmatpush2.msra.mxu0 0.0
  %105 = vmatprep.subr.mxu0 0.0
  %106 = vmatpush2.msra.mxu0 0.0
  %107 = vmatprep.subr.mxu0 0.0
  %108 = vmatpush2.msra.mxu0 0.0
  %109 = vmatprep.mubr.f32.mxu0 0.0
  %110 = vmatmul.mubr.f32.gmra.mxu0 %v40
  %v111 = vpop.f32.mrf.mxu0
  %v112 = vadd.f32 0.0, %v111
  %v113 = vpop.f32.mrf.mxu0
  %114 = vmatprep.mubr.f32.mxu0 0.0
  %115 = vmatmul.mubr.f32.gmra.mxu0 %v43
  %v116 = vpop.f32.mrf.mxu0
  %v117 = vadd.f32 0.0, %v116
  %v118 = vpop.f32.mrf.mxu0
  %119 = vdwg.mxu0
  %v120 = vadd.f32 %v30, %v112
  %v121 = vadd.f32 %v31, %v117
  %122 = vst.msk [vmem:[#allocation2] sm:$0xff] %vm38, %v120
  %123 = vst.msk [vmem:[#allocation2 + $0x8] sm:$0xff] %vm38, %v121
  // Predicated region
  $region30: #{transformer_forward.31} parent=0 // pred_check
    %p124 = pneg %p23
  $region31: #{transformer_forward.31} parent=0 // pred_check_branch
    %126 = sbr.rel (%p124) target = $region33
  $region32: #{transformer_forward.31} parent=0 // pred_region
    %v127 = vld [vmem:[#allocation2] sm:$0xff]
    %v128 = vld [vmem:[#allocation2 + $0x8] sm:$0xff]
    %v129 = vld [vmem:[%s2] sm:$0x1]
    %v131 = vlaneseq
    %v132 = vshrl.u32 %v131, 7
    %v133 = vsub.s32 0, %v132
    %v134 = vrot.slane %v129, %v133
    %v136 = vadd.f32 %v127, %v134
    %v137 = vadd.f32 %v128, %v134
    %v138 = vld [vmem:[%s3] sm:$0xff]
    %v139 = vld [vmem:[%s3 + $0x8] sm:$0xff]
    %v140 = vadd.f32 %v136, %v138
    %v141 = vadd.f32 %v137, %v139
    %v142 = vsel %vm38, %v140, 0.0
    %143 = vadd.xlane.f32.xlu0 %v142
    %v144 = vpop.xlane.xlu0 %143
    %v145 = vsel %vm38, %v141, 0.0
    %146 = vadd.xlane.f32.xlu0 %v145
    %v147 = vpop.xlane.xlu0 %146
    %v148 = vrcp.pop 32.0
    %v149 = vmul.f32 %v144, %v148
    %v150 = vmul.f32 %v147, %v148
    %v151 = vsub.f32 %v140, %v149
    %v152 = vsub.f32 %v141, %v150
    %v153 = vmul.f32 %v151, %v151
    %v154 = vmul.f32 %v152, %v152
    %v155 = vsel %vm38, %v153, 0.0
    %156 = vadd.xlane.f32.xlu0 %v155
    %v157 = vpop.xlane.xlu0 %156
    %v158 = vsel %vm38, %v154, 0.0
    %159 = vadd.xlane.f32.xlu0 %v158
    %v160 = vpop.xlane.xlu0 %159
    %v161 = vmul.f32 %v157, %v148
    %v162 = vmul.f32 %v160, %v148
    %v163 = vadd.f32 %v161, 1e-05
    %v164 = vadd.f32 %v162, 1e-05
    %v165 = vrsqrt.pop %v163
    %v166 = vrsqrt.pop %v164
    %v167 = vmul.f32 %v151, %v165
    %v168 = vmul.f32 %v152, %v166
    %v169 = vld [vmem:[%s4] sm:$0x1]
    %v171 = vlaneseq
    %v172 = vshrl.u32 %v171, 7
    %v173 = vsub.s32 0, %v172
    %v174 = vrot.slane %v169, %v173
    %v176 = vmul.f32 %v167, %v174
    %v177 = vmul.f32 %v168, %v174
    %v178 = vld [vmem:[%s5] sm:$0x1]
    %v180 = vlaneseq
    %v181 = vshrl.u32 %v180, 7
    %v182 = vsub.s32 0, %v181
    %v183 = vrot.slane %v178, %v182
    %v185 = vadd.f32 %v176, %v183
    %v186 = vadd.f32 %v177, %v183
    %187 = vst.msk [vmem:[%s6] sm:$0xff] %vm38, %v185
    %188 = vst.msk [vmem:[%s6 + $0x8] sm:$0xff] %vm38, %v186
  $region33: #{transformer_forward.31} parent=0 // pred_fallthru
    _
  // Predicated region
  $region34: #{transformer_forward.31} parent=0 // pred_check
    _
  $region35: #{transformer_forward.31} parent=0 // pred_check_branch
    %190 = sbr.rel (0) target = $region37
  $region36: #{transformer_forward.31} parent=0 // pred_region
    _
  $region37: #{transformer_forward.31} parent=0 // pred_fallthru
    _
  // Predicated region
  $region38: #{transformer_forward.31} parent=0 // pred_check
    _
  $region39: #{transformer_forward.31} parent=0 // pred_check_branch
    %192 = sbr.rel (0) target = $region41
  $region40: #{transformer_forward.31} parent=0 // pred_region
    _
  $region41: #{transformer_forward.31} parent=0 // pred_fallthru
    _

// kernel: transformer_forward.32
$region0: #{transformer_forward.32}
  #allocation0 [shape = 'u32[]', space=smem, size = 0x4, offset = 0x4, fixed_abs, tag = 'smem constant byte address 0x4 - core index']
  #allocation1 [shape = 'u32[144,128]{1,0:T(1,128)}', space=vmem, size = 0x12000, scoped, tag = 'internal scratch']
  #allocation2 [shape = 'f32[16,128]{1,0:T(8,128)}', space=vmem, size = 0x2000, scoped, tag = 'scratch operand']
  %s0 = inlined_call_operand.vmem [shape: f32[16,32], index: 0, kind: input, shape index: {}]
  %s1 = inlined_call_operand.vmem [shape: f32[32,128], index: 1, kind: input, shape index: {}]
  %s2 = inlined_call_operand.vmem [shape: f32[1,128], index: 2, kind: input, shape index: {}]
  %s3 = inlined_call_operand.vmem [shape: f32[16,128], index: 3, kind: output, shape index: {}]
  %s4 = sld [smem:[#allocation0]]
  $region30: #{transformer_forward.32} parent=0
    _
  %s6 = ssub.s32 1, %s4
  %s7 = scalar_select 0, %s6, %s4
  // Predicated region
  $region2: #{transformer_forward.32} parent=0 // pred_check
    _
  $region3: #{transformer_forward.32} parent=0 // pred_check_branch
    %9 = sbr.rel (0) target = $region5
  $region4: #{transformer_forward.32} parent=0 // pred_region
    _
  $region5: #{transformer_forward.32} parent=0 // pred_fallthru
    _
  // Predicated region
  $region6: #{transformer_forward.32} parent=0 // pred_check
    _
  $region7: #{transformer_forward.32} parent=0 // pred_check_branch
    %11 = sbr.rel (0) target = $region9
  $region8: #{transformer_forward.32} parent=0 // pred_region
    _
  $region9: #{transformer_forward.32} parent=0 // pred_fallthru
    _
  // Predicated region
  $region10: #{transformer_forward.32} parent=0 // pred_check
    _
  $region11: #{transformer_forward.32} parent=0 // pred_check_branch
    %13 = sbr.rel (0) target = $region13
  $region12: #{transformer_forward.32} parent=0 // pred_region
    _
  $region13: #{transformer_forward.32} parent=0 // pred_fallthru
    _
  %p14 = scmp.eq.s32.totalorder 0, 0
  // Predicated region
  $region14: #{transformer_forward.32} parent=0 // pred_check
    %p15 = pneg %p14
  $region15: #{transformer_forward.32} parent=0 // pred_check_branch
    %17 = sbr.rel (%p15) target = $region17
  $region16: #{transformer_forward.32} parent=0 // pred_region
    %18 = vst [vmem:[#allocation2] sm:$0xff] 0.0
    %19 = vst [vmem:[#allocation2 + $0x8] sm:$0xff] 0.0
  $region17: #{transformer_forward.32} parent=0 // pred_fallthru
    _
  %v20 = vld [vmem:[#allocation2] sm:$0xff]
  %v21 = vld [vmem:[#allocation2 + $0x8] sm:$0xff]
  %v22 = vld [vmem:[%s0] sm:$0xff]
  %v23 = vld [vmem:[%s0 + $0x8] sm:$0xff]
  %v24 = vld [vmem:[%s1] sm:$0xff]
  %v25 = vld [vmem:[%s1 + $0x8] sm:$0xff]
  %v26 = vld [vmem:[%s1 + $0x10] sm:$0xff]
  %v27 = vld [vmem:[%s1 + $0x18] sm:$0xff]
  %vm28 = vcmask 261120
  %v30 = vsel %vm28, %v22, 0
  %v33 = vsel %vm28, %v23, 0
  %35 = vmatprep.subr.mxu0 0.0
  %36 = vmatpush1.msra.mxu0 0.0
  %37 = vmatprep.subr.mxu0 0.0
  %38 = vmatpush1.msra.mxu0 0.0
  %39 = vmatprep.subr.mxu0 0.0
  %40 = vmatpush1.msra.mxu0 0.0
  %41 = vmatprep.subr.mxu0 0.0
  %42 = vmatpush1.msra.mxu0 0.0
  %43 = vmatprep.subr.mxu0 0.0
  %44 = vmatpush1.msra.mxu0 0.0
  %45 = vmatprep.subr.mxu0 0.0
  %46 = vmatpush1.msra.mxu0 0.0
  %47 = vmatprep.subr.mxu0 0.0
  %48 = vmatpush1.msra.mxu0 0.0
  %49 = vmatprep.subr.mxu0 0.0
  %50 = vmatpush1.msra.mxu0 0.0
  %51 = vmatprep.subr.mxu0 0.0
  %52 = vmatpush1.msra.mxu0 0.0
  %53 = vmatprep.subr.mxu0 0.0
  %54 = vmatpush1.msra.mxu0 0.0
  %55 = vmatprep.subr.mxu0 0.0
  %56 = vmatpush1.msra.mxu0 0.0
  %57 = vmatprep.subr.mxu0 0.0
  %58 = vmatpush1.msra.mxu0 0.0
  %59 = vmatprep.subr.mxu0 0.0
  %60 = vmatpush1.msra.mxu0 %v27
  %61 = vmatprep.subr.mxu0 0.0
  %62 = vmatpush1.msra.mxu0 %v26
  %63 = vmatprep.subr.mxu0 0.0
  %64 = vmatpush1.msra.mxu0 %v25
  %65 = vmatprep.subr.mxu0 0.0
  %66 = vmatpush1.msra.mxu0 %v24
  %67 = vmatprep.subr.mxu0 0.0
  %68 = vmatpush2.msra.mxu0 0.0
  %69 = vmatprep.subr.mxu0 0.0
  %70 = vmatpush2.msra.mxu0 0.0
  %71 = vmatprep.subr.mxu0 0.0
  %72 = vmatpush2.msra.mxu0 0.0
  %73 = vmatprep.subr.mxu0 0.0
  %74 = vmatpush2.msra.mxu0 0.0
  %75 = vmatprep.subr.mxu0 0.0
  %76 = vmatpush2.msra.mxu0 0.0
  %77 = vmatprep.subr.mxu0 0.0
  %78 = vmatpush2.msra.mxu0 0.0
  %79 = vmatprep.subr.mxu0 0.0
  %80 = vmatpush2.msra.mxu0 0.0
  %81 = vmatprep.subr.mxu0 0.0
  %82 = vmatpush2.msra.mxu0 0.0
  %83 = vmatprep.subr.mxu0 0.0
  %84 = vmatpush2.msra.mxu0 0.0
  %85 = vmatprep.subr.mxu0 0.0
  %86 = vmatpush2.msra.mxu0 0.0
  %87 = vmatprep.subr.mxu0 0.0
  %88 = vmatpush2.msra.mxu0 0.0
  %89 = vmatprep.subr.mxu0 0.0
  %90 = vmatpush2.msra.mxu0 0.0
  %91 = vmatprep.subr.mxu0 0.0
  %92 = vmatpush2.msra.mxu0 0.0
  %93 = vmatprep.subr.mxu0 0.0
  %94 = vmatpush2.msra.mxu0 0.0
  %95 = vmatprep.subr.mxu0 0.0
  %96 = vmatpush2.msra.mxu0 0.0
  %97 = vmatprep.subr.mxu0 0.0
  %98 = vmatpush2.msra.mxu0 0.0
  %99 = vmatprep.mubr.f32.mxu0 0.0
  %100 = vmatmul.mubr.f32.gmra.mxu0 %v30
  %v101 = vpop.f32.mrf.mxu0
  %v102 = vadd.f32 0.0, %v101
  %v103 = vpop.f32.mrf.mxu0
  %104 = vmatprep.mubr.f32.mxu0 0.0
  %105 = vmatmul.mubr.f32.gmra.mxu0 %v33
  %v106 = vpop.f32.mrf.mxu0
  %v107 = vadd.f32 0.0, %v106
  %v108 = vpop.f32.mrf.mxu0
  %109 = vdwg.mxu0
  %v110 = vadd.f32 %v20, %v102
  %v111 = vadd.f32 %v21, %v107
  %112 = vst [vmem:[#allocation2] sm:$0xff] %v110
  %113 = vst [vmem:[#allocation2 + $0x8] sm:$0xff] %v111
  // Predicated region
  $region18: #{transformer_forward.32} parent=0 // pred_check
    %p114 = pneg %p14
  $region19: #{transformer_forward.32} parent=0 // pred_check_branch
    %116 = sbr.rel (%p114) target = $region21
  $region20: #{transformer_forward.32} parent=0 // pred_region
    %v117 = vld [vmem:[#allocation2] sm:$0xff]
    %v118 = vld [vmem:[#allocation2 + $0x8] sm:$0xff]
    %v119 = vld [vmem:[%s2] sm:$0x1]
    %v121 = vlaneseq
    %v122 = vshrl.u32 %v121, 7
    %v123 = vsub.s32 0, %v122
    %v124 = vrot.slane %v119, %v123
    %v126 = vadd.f32 %v117, %v124
    %v127 = vadd.f32 %v118, %v124
    %v128 = vmax.f32 %v126, 0.0
    %v129 = vmax.f32 %v127, 0.0
    %130 = vst [vmem:[%s3] sm:$0xff] %v128
    %131 = vst [vmem:[%s3 + $0x8] sm:$0xff] %v129
  $region21: #{transformer_forward.32} parent=0 // pred_fallthru
    _
  // Predicated region
  $region22: #{transformer_forward.32} parent=0 // pred_check
    _
  $region23: #{transformer_forward.32} parent=0 // pred_check_branch
    %133 = sbr.rel (0) target = $region25
  $region24: #{transformer_forward.32} parent=0 // pred_region
    _
  $region25: #{transformer_forward.32} parent=0 // pred_fallthru
    _
  // Predicated region
  $region26: #{transformer_forward.32} parent=0 // pred_check
    _
  $region27: #{transformer_forward.32} parent=0 // pred_check_branch
    %135 = sbr.rel (0) target = $region29
  $region28: #{transformer_forward.32} parent=0 // pred_region
    _
  $region29: #{transformer_forward.32} parent=0 // pred_fallthru
    _

// kernel: transformer_forward.29
$region0: #{transformer_forward.29}
  #allocation0 [shape = 'u32[]', space=smem, size = 0x4, offset = 0x4, fixed_abs, tag = 'smem constant byte address 0x4 - core index']
  #allocation1 [shape = 'u32[144,128]{1,0:T(1,128)}', space=vmem, size = 0x12000, scoped, tag = 'internal scratch']
  #allocation2 [shape = 'f32[16,128]{1,0:T(8,128)}', space=vmem, size = 0x2000, scoped, tag = 'scratch operand']
  %s0 = inlined_call_operand.vmem [shape: f32[16,32], index: 0, kind: input, shape index: {}]
  %s1 = inlined_call_operand.vmem [shape: f32[32,128], index: 1, kind: input, shape index: {}]
  %s2 = inlined_call_operand.vmem [shape: f32[16,128], index: 2, kind: output, shape index: {}]
  %s3 = sld [smem:[#allocation0]]
  $region26: #{transformer_forward.29} parent=0
    _
  %s5 = ssub.s32 1, %s3
  %s6 = scalar_select 0, %s5, %s3
  // Predicated region
  $region2: #{transformer_forward.29} parent=0 // pred_check
    _
  $region3: #{transformer_forward.29} parent=0 // pred_check_branch
    %8 = sbr.rel (0) target = $region5
  $region4: #{transformer_forward.29} parent=0 // pred_region
    _
  $region5: #{transformer_forward.29} parent=0 // pred_fallthru
    _
  // Predicated region
  $region6: #{transformer_forward.29} parent=0 // pred_check
    _
  $region7: #{transformer_forward.29} parent=0 // pred_check_branch
    %10 = sbr.rel (0) target = $region9
  $region8: #{transformer_forward.29} parent=0 // pred_region
    _
  $region9: #{transformer_forward.29} parent=0 // pred_fallthru
    _
  %p11 = scmp.eq.s32.totalorder 0, 0
  // Predicated region
  $region10: #{transformer_forward.29} parent=0 // pred_check
    %p12 = pneg %p11
  $region11: #{transformer_forward.29} parent=0 // pred_check_branch
    %14 = sbr.rel (%p12) target = $region13
  $region12: #{transformer_forward.29} parent=0 // pred_region
    %15 = vst [vmem:[#allocation2] sm:$0xff] 0.0
    %16 = vst [vmem:[#allocation2 + $0x8] sm:$0xff] 0.0
  $region13: #{transformer_forward.29} parent=0 // pred_fallthru
    _
  %v17 = vld [vmem:[#allocation2] sm:$0xff]
  %v18 = vld [vmem:[#allocation2 + $0x8] sm:$0xff]
  %v19 = vld [vmem:[%s0] sm:$0xff]
  %v20 = vld [vmem:[%s0 + $0x8] sm:$0xff]
  %v21 = vld [vmem:[%s1] sm:$0xff]
  %v22 = vld [vmem:[%s1 + $0x8] sm:$0xff]
  %v23 = vld [vmem:[%s1 + $0x10] sm:$0xff]
  %v24 = vld [vmem:[%s1 + $0x18] sm:$0xff]
  %vm25 = vcmask 261120
  %v27 = vsel %vm25, %v19, 0
  %v30 = vsel %vm25, %v20, 0
  %32 = vmatprep.subr.mxu0 0.0
  %33 = vmatpush1.msra.mxu0 0.0
  %34 = vmatprep.subr.mxu0 0.0
  %35 = vmatpush1.msra.mxu0 0.0
  %36 = vmatprep.subr.mxu0 0.0
  %37 = vmatpush1.msra.mxu0 0.0
  %38 = vmatprep.subr.mxu0 0.0
  %39 = vmatpush1.msra.mxu0 0.0
  %40 = vmatprep.subr.mxu0 0.0
  %41 = vmatpush1.msra.mxu0 0.0
  %42 = vmatprep.subr.mxu0 0.0
  %43 = vmatpush1.msra.mxu0 0.0
  %44 = vmatprep.subr.mxu0 0.0
  %45 = vmatpush1.msra.mxu0 0.0
  %46 = vmatprep.subr.mxu0 0.0
  %47 = vmatpush1.msra.mxu0 0.0
  %48 = vmatprep.subr.mxu0 0.0
  %49 = vmatpush1.msra.mxu0 0.0
  %50 = vmatprep.subr.mxu0 0.0
  %51 = vmatpush1.msra.mxu0 0.0
  %52 = vmatprep.subr.mxu0 0.0
  %53 = vmatpush1.msra.mxu0 0.0
  %54 = vmatprep.subr.mxu0 0.0
  %55 = vmatpush1.msra.mxu0 0.0
  %56 = vmatprep.subr.mxu0 0.0
  %57 = vmatpush1.msra.mxu0 %v24
  %58 = vmatprep.subr.mxu0 0.0
  %59 = vmatpush1.msra.mxu0 %v23
  %60 = vmatprep.subr.mxu0 0.0
  %61 = vmatpush1.msra.mxu0 %v22
  %62 = vmatprep.subr.mxu0 0.0
  %63 = vmatpush1.msra.mxu0 %v21
  %64 = vmatprep.subr.mxu0 0.0
  %65 = vmatpush2.msra.mxu0 0.0
  %66 = vmatprep.subr.mxu0 0.0
  %67 = vmatpush2.msra.mxu0 0.0
  %68 = vmatprep.subr.mxu0 0.0
  %69 = vmatpush2.msra.mxu0 0.0
  %70 = vmatprep.subr.mxu0 0.0
  %71 = vmatpush2.msra.mxu0 0.0
  %72 = vmatprep.subr.mxu0 0.0
  %73 = vmatpush2.msra.mxu0 0.0
  %74 = vmatprep.subr.mxu0 0.0
  %75 = vmatpush2.msra.mxu0 0.0
  %76 = vmatprep.subr.mxu0 0.0
  %77 = vmatpush2.msra.mxu0 0.0
  %78 = vmatprep.subr.mxu0 0.0
  %79 = vmatpush2.msra.mxu0 0.0
  %80 = vmatprep.subr.mxu0 0.0
  %81 = vmatpush2.msra.mxu0 0.0
  %82 = vmatprep.subr.mxu0 0.0
  %83 = vmatpush2.msra.mxu0 0.0
  %84 = vmatprep.subr.mxu0 0.0
  %85 = vmatpush2.msra.mxu0 0.0
  %86 = vmatprep.subr.mxu0 0.0
  %87 = vmatpush2.msra.mxu0 0.0
  %88 = vmatprep.subr.mxu0 0.0
  %89 = vmatpush2.msra.mxu0 0.0
  %90 = vmatprep.subr.mxu0 0.0
  %91 = vmatpush2.msra.mxu0 0.0
  %92 = vmatprep.subr.mxu0 0.0
  %93 = vmatpush2.msra.mxu0 0.0
  %94 = vmatprep.subr.mxu0 0.0
  %95 = vmatpush2.msra.mxu0 0.0
  %96 = vmatprep.mubr.f32.mxu0 0.0
  %97 = vmatmul.mubr.f32.gmra.mxu0 %v27
  %v98 = vpop.f32.mrf.mxu0
  %v99 = vadd.f32 0.0, %v98
  %v100 = vpop.f32.mrf.mxu0
  %101 = vmatprep.mubr.f32.mxu0 0.0
  %102 = vmatmul.mubr.f32.gmra.mxu0 %v30
  %v103 = vpop.f32.mrf.mxu0
  %v104 = vadd.f32 0.0, %v103
  %v105 = vpop.f32.mrf.mxu0
  %106 = vdwg.mxu0
  %v107 = vadd.f32 %v17, %v99
  %v108 = vadd.f32 %v18, %v104
  %109 = vst [vmem:[#allocation2] sm:$0xff] %v107
  %110 = vst [vmem:[#allocation2 + $0x8] sm:$0xff] %v108
  // Predicated region
  $region14: #{transformer_forward.29} parent=0 // pred_check
    %p111 = pneg %p11
  $region15: #{transformer_forward.29} parent=0 // pred_check_branch
    %113 = sbr.rel (%p111) target = $region17
  $region16: #{transformer_forward.29} parent=0 // pred_region
    %v114 = vld [vmem:[#allocation2] sm:$0xff]
    %v115 = vld [vmem:[#allocation2 + $0x8] sm:$0xff]
    %116 = vst [vmem:[%s2] sm:$0xff] %v114
    %117 = vst [vmem:[%s2 + $0x8] sm:$0xff] %v115
  $region17: #{transformer_forward.29} parent=0 // pred_fallthru
    _
  // Predicated region
  $region18: #{transformer_forward.29} parent=0 // pred_check
    _
  $region19: #{transformer_forward.29} parent=0 // pred_check_branch
    %119 = sbr.rel (0) target = $region21
  $region20: #{transformer_forward.29} parent=0 // pred_region
    _
  $region21: #{transformer_forward.29} parent=0 // pred_fallthru
    _
  // Predicated region
  $region22: #{transformer_forward.29} parent=0 // pred_check
    _
  $region23: #{transformer_forward.29} parent=0 // pred_check_branch
    %121 = sbr.rel (0) target = $region25
  $region24: #{transformer_forward.29} parent=0 // pred_region
    _
  $region25: #{transformer_forward.29} parent=0 // pred_fallthru
    _

// kernel: transformer_forward.30
$region0: #{transformer_forward.30}
  #allocation0 [shape = 'u32[]', space=smem, size = 0x4, offset = 0x4, fixed_abs, tag = 'smem constant byte address 0x4 - core index']
  #allocation1 [shape = 'u32[144,128]{1,0:T(1,128)}', space=vmem, size = 0x12000, scoped, tag = 'internal scratch']
  %s0 = inlined_call_operand.vmem [shape: f32[2,8,32], index: 0, kind: input, shape index: {}]
  %s1 = inlined_call_operand.vmem [shape: f32[2,8,32], index: 1, kind: input, shape index: {}]
  %s2 = inlined_call_operand.vmem [shape: f32[2,8,32], index: 2, kind: input, shape index: {}]
  %s3 = inlined_call_operand.vmem [shape: f32[2,8,32], index: 3, kind: output, shape index: {}]
  %s4 = sld [smem:[#allocation0]]
  $region45: #{transformer_forward.30} parent=0
    _
  %s6 = ssub.s32 1, %s4
  %s7 = scalar_select 0, %s6, %s4
  loop: start=0, step=1, limit=4
  $region2: #{transformer_forward.30} parent=0 // loop_pre_header
    _
  $region3: #{transformer_forward.30} parent=0 // loop_header
    %s9 = sphi 0, %s13
    %p10 = scmp.ge.s32.totalorder %s9, 4
    %s19 = sphi 0, %s21
    %s22 = sphi 0, %s19
    %s23 = sphi 0, %s22
    %s39 = sphi 0, %s23
    %s45 = sphi 0, %s47
    %s48 = sphi 0, %s45
    %s49 = sphi 0, %s48
    %s65 = sphi 0, %s49
    %s71 = sphi 0, %s73
    %s74 = sphi 0, %s71
    %s75 = sphi 0, %s74
    %s91 = sphi 0, %s75
    %s97 = sphi 0, %s99
    %s100 = sphi 0, %s97
    %s101 = sphi 0, %s100
    %s117 = sphi 0, %s101
  $region4: #{transformer_forward.30} parent=0 // loop_header_branch
    %12 = sbr.rel (%p10) target = $region8
  $region5: #{transformer_forward.30} parent=0 // loop_body
    %s14 = ssub.s32 %s9, 1
    %s15 = ssub.s32 %s9, 2
    %s16 = sadd.s32 %s9, 1
    %s17 = ssub.s32 %s9, %s16
    %p18 = scmp.eq.s32.totalorder %s17, 0
    %s20 = sadd.s32 %s19, 1
    %s21 = scalar_select %p18, %s19, %s20
    %p24 = pneg %p18
    %p25 = scmp.eq.s32.totalorder %s9, 1
    %p26 = por %p24, %p25
    %p27 = scmp.ne.s32.totalorder %s19, %s22
    %p28 = scmp.eq.s32.totalorder %s9, 0
    %p29 = por %p27, %p28
    %p30 = scmp.ne.s32.totalorder %s19, %s22
    %p31 = scmp.eq.s32.totalorder %s14, 1
    %p32 = por %p30, %p31
    %p33 = scmp.ne.s32.totalorder %s22, %s23
    %p34 = scmp.eq.s32.totalorder %s14, 0
    %p35 = por %p33, %p34
    %p36 = scmp.ne.s32.totalorder %s22, %s23
    %p37 = scmp.eq.s32.totalorder %s15, 1
    %p38 = por %p36, %p37
    %p40 = scmp.ne.s32.totalorder %s23, %s39
    %p41 = scmp.eq.s32.totalorder %s15, 0
    %p42 = por %p40, %p41
    %s43 = ssub.s32 %s9, %s16
    %p44 = scmp.eq.s32.totalorder %s43, 0
    %s46 = sadd.s32 %s45, 1
    %s47 = scalar_select %p44, %s45, %s46
    %p50 = pneg %p44
    %p51 = scmp.eq.s32.totalorder %s9, 1
    %p52 = por %p50, %p51
    %p53 = scmp.ne.s32.totalorder %s45, %s48
    %p54 = scmp.eq.s32.totalorder %s9, 0
    %p55 = por %p53, %p54
    %p56 = scmp.ne.s32.totalorder %s45, %s48
    %p57 = scmp.eq.s32.totalorder %s14, 1
    %p58 = por %p56, %p57
    %p59 = scmp.ne.s32.totalorder %s48, %s49
    %p60 = scmp.eq.s32.totalorder %s14, 0
    %p61 = por %p59, %p60
    %p62 = scmp.ne.s32.totalorder %s48, %s49
    %p63 = scmp.eq.s32.totalorder %s15, 1
    %p64 = por %p62, %p63
    %p66 = scmp.ne.s32.totalorder %s49, %s65
    %p67 = scmp.eq.s32.totalorder %s15, 0
    %p68 = por %p66, %p67
    %s69 = ssub.s32 %s9, %s16
    %p70 = scmp.eq.s32.totalorder %s69, 0
    %s72 = sadd.s32 %s71, 1
    %s73 = scalar_select %p70, %s71, %s72
    %p76 = pneg %p70
    %p77 = scmp.eq.s32.totalorder %s9, 1
    %p78 = por %p76, %p77
    %p79 = scmp.ne.s32.totalorder %s71, %s74
    %p80 = scmp.eq.s32.totalorder %s9, 0
    %p81 = por %p79, %p80
    %p82 = scmp.ne.s32.totalorder %s71, %s74
    %p83 = scmp.eq.s32.totalorder %s14, 1
    %p84 = por %p82, %p83
    %p85 = scmp.ne.s32.totalorder %s74, %s75
    %p86 = scmp.eq.s32.totalorder %s14, 0
    %p87 = por %p85, %p86
    %p88 = scmp.ne.s32.totalorder %s74, %s75
    %p89 = scmp.eq.s32.totalorder %s15, 1
    %p90 = por %p88, %p89
    %p92 = scmp.ne.s32.totalorder %s75, %s91
    %p93 = scmp.eq.s32.totalorder %s15, 0
    %p94 = por %p92, %p93
    %s95 = ssub.s32 %s9, %s16
    %p96 = scmp.eq.s32.totalorder %s95, 0
    %s98 = sadd.s32 %s97, 1
    %s99 = scalar_select %p96, %s97, %s98
    %p102 = pneg %p96
    %p103 = scmp.eq.s32.totalorder %s9, 1
    %p104 = por %p102, %p103
    %p105 = scmp.ne.s32.totalorder %s97, %s100
    %p106 = scmp.eq.s32.totalorder %s9, 0
    %p107 = por %p105, %p106
    %p108 = scmp.ne.s32.totalorder %s97, %s100
    %p109 = scmp.eq.s32.totalorder %s14, 1
    %p110 = por %p108, %p109
    %p111 = scmp.ne.s32.totalorder %s100, %s101
    %p112 = scmp.eq.s32.totalorder %s14, 0
    %p113 = por %p111, %p112
    %p114 = scmp.ne.s32.totalorder %s100, %s101
    %p115 = scmp.eq.s32.totalorder %s15, 1
    %p116 = por %p114, %p115
    %p118 = scmp.ne.s32.totalorder %s101, %s117
    %p119 = scmp.eq.s32.totalorder %s15, 0
    %p120 = por %p118, %p119
    %p121 = scmp.le.s32.totalorder 1, %s9
    %p122 = scmp.lt.s32.totalorder %s9, 3
    %p123 = pnand %p121, %p122
    %p124 = pneg %p123
    // Predicated region
    $region9: #{transformer_forward.30} parent=5 // pred_check
      _
    $region10: #{transformer_forward.30} parent=5 // pred_check_branch
      %126 = sbr.rel (%p123) target = $region12
    $region11: #{transformer_forward.30} parent=5 // pred_region
      %s127 = ssub.s32 %s9, 1
    $region12: #{transformer_forward.30} parent=5 // pred_fallthru
      _
    %p128 = scmp.lt.s32.totalorder %s9, 2
    // Predicated region
    $region13: #{transformer_forward.30} parent=5 // pred_check
      %p129 = pneg %p128
    $region14: #{transformer_forward.30} parent=5 // pred_check_branch
      %131 = sbr.rel (%p129) target = $region16
    $region15: #{transformer_forward.30} parent=5 // pred_region
      // Predicated region
      $region17: #{transformer_forward.30} parent=15 // pred_check
        %p132 = pneg %p29
      $region18: #{transformer_forward.30} parent=15 // pred_check_branch
        %134 = sbr.rel (%p132) target = $region20
      $region19: #{transformer_forward.30} parent=15 // pred_region
        %p135 = scmp.lt.s32.totalorder %s9, 1
        %s136 = scalar_select %p135, %s9, 1
        %s137 = smul.addr %s136, 8
        %s138 = scalar_lea.vmem %s0, %s137
      $region20: #{transformer_forward.30} parent=15 // pred_fallthru
        _
      // Predicated region
      $region21: #{transformer_forward.30} parent=15 // pred_check
        %p139 = pneg %p55
      $region22: #{transformer_forward.30} parent=15 // pred_check_branch
        %141 = sbr.rel (%p139) target = $region24
      $region23: #{transformer_forward.30} parent=15 // pred_region
        %p142 = scmp.lt.s32.totalorder %s9, 1
        %s143 = scalar_select %p142, %s9, 1
        %s144 = smul.addr %s143, 8
        %s145 = scalar_lea.vmem %s1, %s144
      $region24: #{transformer_forward.30} parent=15 // pred_fallthru
        _
      // Predicated region
      $region25: #{transformer_forward.30} parent=15 // pred_check
        %p146 = pneg %p81
      $region26: #{transformer_forward.30} parent=15 // pred_check_branch
        %148 = sbr.rel (%p146) target = $region28
      $region27: #{transformer_forward.30} parent=15 // pred_region
        %p149 = scmp.lt.s32.totalorder %s9, 1
        %s150 = scalar_select %p149, %s9, 1
        %s151 = smul.addr %s150, 8
        %s152 = scalar_lea.vmem %s2, %s151
      $region28: #{transformer_forward.30} parent=15 // pred_fallthru
        _
    $region16: #{transformer_forward.30} parent=5 // pred_fallthru
      _
    %p153 = scmp.le.s32.totalorder 1, %s9
    %p154 = scmp.lt.s32.totalorder %s9, 3
    %p155 = pnand %p153, %p154
    %p156 = pneg %p155
    // Predicated region
    $region29: #{transformer_forward.30} parent=5 // pred_check
      _
    $region30: #{transformer_forward.30} parent=5 // pred_check_branch
      %158 = sbr.rel (%p155) target = $region32
    $region31: #{transformer_forward.30} parent=5 // pred_region
      %s159 = ssub.s32 %s9, 1
      %p160 = scmp.lt.s32.totalorder %s14, 1
      %s161 = scalar_select %p160, %s14, 1
      %s162 = smul.addr %s161, 8
      %s163 = scalar_lea.vmem %s0, %s162
      %p164 = pneg %p35
      %p165 = pneg %p32
      %p166 = scmp.lt.s32.totalorder %s14, 1
      %s167 = scalar_select %p166, %s14, 1
      %s168 = smul.addr %s167, 8
      %s169 = scalar_lea.vmem %s1, %s168
      %p170 = pneg %p61
      %p171 = pneg %p58
      %p172 = scmp.lt.s32.totalorder %s14, 1
      %s173 = scalar_select %p172, %s14, 1
      %s174 = smul.addr %s173, 8
      %s175 = scalar_lea.vmem %s2, %s174
      %p176 = pneg %p87
      %p177 = pneg %p84
      %p178 = pneg %p113
      %p179 = pneg %p110
      %p180 = scmp.lt.s32.totalorder %s14, 1
      %s181 = scalar_select %p180, %s14, 1
      %s182 = smul.addr %s181, 8
      %s183 = scalar_lea.vmem %s3, %s182
      %p184 = scmp.lt.s32.totalorder %s14, 1
      %s185 = scalar_select %p184, %s14, 1
      %s186 = smul.addr %s185, 8
      %s187 = scalar_lea.vmem %s0, %s186
      %p188 = scmp.lt.s32.totalorder %s14, 1
      %s189 = scalar_select %p188, %s14, 1
      %s190 = smul.addr %s189, 8
      %s191 = scalar_lea.vmem %s1, %s190
      %p192 = scmp.lt.s32.totalorder %s14, 1
      %s193 = scalar_select %p192, %s14, 1
      %s194 = smul.addr %s193, 8
      %s195 = scalar_lea.vmem %s2, %s194
      %p196 = scmp.lt.s32.totalorder %s14, 1
      %s197 = scalar_select %p196, %s14, 1
      %s198 = smul.addr %s197, 8
      %s199 = scalar_lea.vmem %s3, %s198
      %v200 = vld [vmem:[%s187] sm:$0xff]
      %v201 = vmul.f32 %v200, 0.17677669
      %v202 = vld [vmem:[%s191] sm:$0xff]
      %v203 = vld [vmem:[%s195] sm:$0xff]
      %vm204 = vcmask 64512
      %v206 = vsel %vm204, %v201, 0
      %v209 = vsel %vm204, %v202, 0
      %211 = vmatprep.subr.mxu0 0.0
      %212 = vmatpush1.xpose.msra.mxu0 0.0
      %213 = vmatprep.subr.mxu0 0.0
      %214 = vmatpush1.xpose.msra.mxu0 0.0
      %215 = vmatprep.subr.mxu0 0.0
      %216 = vmatpush1.xpose.msra.mxu0 0.0
      %217 = vmatprep.subr.mxu0 0.0
      %218 = vmatpush1.xpose.msra.mxu0 0.0
      %219 = vmatprep.subr.mxu0 0.0
      %220 = vmatpush1.xpose.msra.mxu0 0.0
      %221 = vmatprep.subr.mxu0 0.0
      %222 = vmatpush1.xpose.msra.mxu0 0.0
      %223 = vmatprep.subr.mxu0 0.0
      %224 = vmatpush1.xpose.msra.mxu0 0.0
      %225 = vmatprep.subr.mxu0 0.0
      %226 = vmatpush1.xpose.msra.mxu0 0.0
      %227 = vmatprep.subr.mxu0 0.0
      %228 = vmatpush1.xpose.msra.mxu0 0.0
      %229 = vmatprep.subr.mxu0 0.0
      %230 = vmatpush1.xpose.msra.mxu0 0.0
      %231 = vmatprep.subr.mxu0 0.0
      %232 = vmatpush1.xpose.msra.mxu0 0.0
      %233 = vmatprep.subr.mxu0 0.0
      %234 = vmatpush1.xpose.msra.mxu0 0.0
      %235 = vmatprep.subr.mxu0 0.0
      %236 = vmatpush1.xpose.msra.mxu0 0.0
      %237 = vmatprep.subr.mxu0 0.0
      %238 = vmatpush1.xpose.msra.mxu0 0.0
      %239 = vmatprep.subr.mxu0 0.0
      %240 = vmatpush1.xpose.msra.mxu0 0.0
      %241 = vmatprep.subr.mxu0 0.0
      %242 = vmatpush1.xpose.msra.mxu0 %v209
      %243 = vmatprep.subr.mxu0 0.0
      %244 = vmatpush2.xpose.msra.mxu0 0.0
      %245 = vmatprep.subr.mxu0 0.0
      %246 = vmatpush2.xpose.msra.mxu0 0.0
      %247 = vmatprep.subr.mxu0 0.0
      %248 = vmatpush2.xpose.msra.mxu0 0.0
      %249 = vmatprep.subr.mxu0 0.0
      %250 = vmatpush2.xpose.msra.mxu0 0.0
      %251 = vmatprep.subr.mxu0 0.0
      %252 = vmatpush2.xpose.msra.mxu0 0.0
      %253 = vmatprep.subr.mxu0 0.0
      %254 = vmatpush2.xpose.msra.mxu0 0.0
      %255 = vmatprep.subr.mxu0 0.0
      %256 = vmatpush2.xpose.msra.mxu0 0.0
      %257 = vmatprep.subr.mxu0 0.0
      %258 = vmatpush2.xpose.msra.mxu0 0.0
      %259 = vmatprep.subr.mxu0 0.0
      %260 = vmatpush2.xpose.msra.mxu0 0.0
      %261 = vmatprep.subr.mxu0 0.0
      %262 = vmatpush2.xpose.msra.mxu0 0.0
      %263 = vmatprep.subr.mxu0 0.0
      %264 = vmatpush2.xpose.msra.mxu0 0.0
      %265 = vmatprep.subr.mxu0 0.0
      %266 = vmatpush2.xpose.msra.mxu0 0.0
      %267 = vmatprep.subr.mxu0 0.0
      %268 = vmatpush2.xpose.msra.mxu0 0.0
      %269 = vmatprep.subr.mxu0 0.0
      %270 = vmatpush2.xpose.msra.mxu0 0.0
      %271 = vmatprep.subr.mxu0 0.0
      %272 = vmatpush2.xpose.msra.mxu0 0.0
      %273 = vmatprep.subr.mxu0 0.0
      %274 = vmatpush2.xpose.msra.mxu0 0.0
      %275 = vmatprep.mubr.f32.mxu0 0.0
      %276 = vmatmul.mubr.f32.gmra.mxu0 %v206
      %v277 = vpop.f32.mrf.mxu0
      %v278 = vadd.f32 0.0, %v277
      %v279 = vpop.f32.mrf.mxu0
      %280 = vdwg.mxu0
      %v281 = vsel %vm204, %v278, -inf
      %282 = vmax.xlane.f32.xlu0 %v281
      %v283 = vpop.xlane.xlu0 %282
      %v284 = vsub.f32 %v278, %v283
      %v285 = vmul.f32 %v284, 1.442695
      %v286 = vpow.pop %v285
      %v287 = vsel %vm204, %v286, 0.0
      %288 = vadd.xlane.f32.xlu0 %v287
      %v289 = vpop.xlane.xlu0 %288
      %v290 = vrcp.pop %v289
      %v291 = vmul.f32 %v286, %v290
      %v293 = vsel %vm204, %v291, 0
      %295 = vmatprep.subr.mxu0 0.0
      %296 = vmatpush1.msra.mxu0 0.0
      %297 = vmatprep.subr.mxu0 0.0
      %298 = vmatpush1.msra.mxu0 0.0
      %299 = vmatprep.subr.mxu0 0.0
      %300 = vmatpush1.msra.mxu0 0.0
      %301 = vmatprep.subr.mxu0 0.0
      %302 = vmatpush1.msra.mxu0 0.0
      %303 = vmatprep.subr.mxu0 0.0
      %304 = vmatpush1.msra.mxu0 0.0
      %305 = vmatprep.subr.mxu0 0.0
      %306 = vmatpush1.msra.mxu0 0.0
      %307 = vmatprep.subr.mxu0 0.0
      %308 = vmatpush1.msra.mxu0 0.0
      %309 = vmatprep.subr.mxu0 0.0
      %310 = vmatpush1.msra.mxu0 0.0
      %311 = vmatprep.subr.mxu0 0.0
      %312 = vmatpush1.msra.mxu0 0.0
      %313 = vmatprep.subr.mxu0 0.0
      %314 = vmatpush1.msra.mxu0 0.0
      %315 = vmatprep.subr.mxu0 0.0
      %316 = vmatpush1.msra.mxu0 0.0
      %317 = vmatprep.subr.mxu0 0.0
      %318 = vmatpush1.msra.mxu0 0.0
      %319 = vmatprep.subr.mxu0 0.0
      %320 = vmatpush1.msra.mxu0 0.0
      %321 = vmatprep.subr.mxu0 0.0
      %322 = vmatpush1.msra.mxu0 0.0
      %323 = vmatprep.subr.mxu0 0.0
      %324 = vmatpush1.msra.mxu0 0.0
      %325 = vmatprep.subr.mxu0 0.0
      %326 = vmatpush1.msra.mxu0 %v203
      %327 = vmatprep.subr.mxu0 0.0
      %328 = vmatpush2.msra.mxu0 0.0
      %329 = vmatprep.subr.mxu0 0.0
      %330 = vmatpush2.msra.mxu0 0.0
      %331 = vmatprep.subr.mxu0 0.0
      %332 = vmatpush2.msra.mxu0 0.0
      %333 = vmatprep.subr.mxu0 0.0
      %334 = vmatpush2.msra.mxu0 0.0
      %335 = vmatprep.subr.mxu0 0.0
      %336 = vmatpush2.msra.mxu0 0.0
      %337 = vmatprep.subr.mxu0 0.0
      %338 = vmatpush2.msra.mxu0 0.0
      %339 = vmatprep.subr.mxu0 0.0
      %340 = vmatpush2.msra.mxu0 0.0
      %341 = vmatprep.subr.mxu0 0.0
      %342 = vmatpush2.msra.mxu0 0.0
      %343 = vmatprep.subr.mxu0 0.0
      %344 = vmatpush2.msra.mxu0 0.0
      %345 = vmatprep.subr.mxu0 0.0
      %346 = vmatpush2.msra.mxu0 0.0
      %347 = vmatprep.subr.mxu0 0.0
      %348 = vmatpush2.msra.mxu0 0.0
      %349 = vmatprep.subr.mxu0 0.0
      %350 = vmatpush2.msra.mxu0 0.0
      %351 = vmatprep.subr.mxu0 0.0
      %352 = vmatpush2.msra.mxu0 0.0
      %353 = vmatprep.subr.mxu0 0.0
      %354 = vmatpush2.msra.mxu0 0.0
      %355 = vmatprep.subr.mxu0 0.0
      %356 = vmatpush2.msra.mxu0 0.0
      %357 = vmatprep.subr.mxu0 0.0
      %358 = vmatpush2.msra.mxu0 0.0
      %359 = vmatprep.mubr.f32.mxu0 0.0
      %360 = vmatmul.mubr.f32.gmra.mxu0 %v293
      %v361 = vpop.f32.mrf.mxu0
      %v362 = vadd.f32 0.0, %v361
      %v363 = vpop.f32.mrf.mxu0
      %364 = vdwg.mxu0
      %365 = vrot.lane.b32.xlu0 %v201, 120
      %v366 = vpop.permute.xlu0 %365
      %367 = vrot.lane.b32.xlu0 %v202, 120
      %v368 = vpop.permute.xlu0 %367
      %v369 = vsel %vm204, %v366, 0
      %v371 = vsel %vm204, %v368, 0
      %373 = vmatprep.subr.mxu0 0.0
      %374 = vmatpush1.xpose.msra.mxu0 0.0
      %375 = vmatprep.subr.mxu0 0.0
      %376 = vmatpush1.xpose.msra.mxu0 0.0
      %377 = vmatprep.subr.mxu0 0.0
      %378 = vmatpush1.xpose.msra.mxu0 0.0
      %379 = vmatprep.subr.mxu0 0.0
      %380 = vmatpush1.xpose.msra.mxu0 0.0
      %381 = vmatprep.subr.mxu0 0.0
      %382 = vmatpush1.xpose.msra.mxu0 0.0
      %383 = vmatprep.subr.mxu0 0.0
      %384 = vmatpush1.xpose.msra.mxu0 0.0
      %385 = vmatprep.subr.mxu0 0.0
      %386 = vmatpush1.xpose.msra.mxu0 0.0
      %387 = vmatprep.subr.mxu0 0.0
      %388 = vmatpush1.xpose.msra.mxu0 0.0
      %389 = vmatprep.subr.mxu0 0.0
      %390 = vmatpush1.xpose.msra.mxu0 0.0
      %391 = vmatprep.subr.mxu0 0.0
      %392 = vmatpush1.xpose.msra.mxu0 0.0
      %393 = vmatprep.subr.mxu0 0.0
      %394 = vmatpush1.xpose.msra.mxu0 0.0
      %395 = vmatprep.subr.mxu0 0.0
      %396 = vmatpush1.xpose.msra.mxu0 0.0
      %397 = vmatprep.subr.mxu0 0.0
      %398 = vmatpush1.xpose.msra.mxu0 0.0
      %399 = vmatprep.subr.mxu0 0.0
      %400 = vmatpush1.xpose.msra.mxu0 0.0
      %401 = vmatprep.subr.mxu0 0.0
      %402 = vmatpush1.xpose.msra.mxu0 0.0
      %403 = vmatprep.subr.mxu0 0.0
      %404 = vmatpush1.xpose.msra.mxu0 %v371
      %405 = vmatprep.subr.mxu0 0.0
      %406 = vmatpush2.xpose.msra.mxu0 0.0
      %407 = vmatprep.subr.mxu0 0.0
      %408 = vmatpush2.xpose.msra.mxu0 0.0
      %409 = vmatprep.subr.mxu0 0.0
      %410 = vmatpush2.xpose.msra.mxu0 0.0
      %411 = vmatprep.subr.mxu0 0.0
      %412 = vmatpush2.xpose.msra.mxu0 0.0
      %413 = vmatprep.subr.mxu0 0.0
      %414 = vmatpush2.xpose.msra.mxu0 0.0
      %415 = vmatprep.subr.mxu0 0.0
      %416 = vmatpush2.xpose.msra.mxu0 0.0
      %417 = vmatprep.subr.mxu0 0.0
      %418 = vmatpush2.xpose.msra.mxu0 0.0
      %419 = vmatprep.subr.mxu0 0.0
      %420 = vmatpush2.xpose.msra.mxu0 0.0
      %421 = vmatprep.subr.mxu0 0.0
      %422 = vmatpush2.xpose.msra.mxu0 0.0
      %423 = vmatprep.subr.mxu0 0.0
      %424 = vmatpush2.xpose.msra.mxu0 0.0
      %425 = vmatprep.subr.mxu0 0.0
      %426 = vmatpush2.xpose.msra.mxu0 0.0
      %427 = vmatprep.subr.mxu0 0.0
      %428 = vmatpush2.xpose.msra.mxu0 0.0
      %429 = vmatprep.subr.mxu0 0.0
      %430 = vmatpush2.xpose.msra.mxu0 0.0
      %431 = vmatprep.subr.mxu0 0.0
      %432 = vmatpush2.xpose.msra.mxu0 0.0
      %433 = vmatprep.subr.mxu0 0.0
      %434 = vmatpush2.xpose.msra.mxu0 0.0
      %435 = vmatprep.subr.mxu0 0.0
      %436 = vmatpush2.xpose.msra.mxu0 0.0
      %437 = vmatprep.mubr.f32.mxu0 0.0
      %438 = vmatmul.mubr.f32.gmra.mxu0 %v369
      %v439 = vpop.f32.mrf.mxu0
      %v440 = vadd.f32 0.0, %v439
      %v441 = vpop.f32.mrf.mxu0
      %442 = vdwg.mxu0
      %v443 = vsel %vm204, %v440, -inf
      %444 = vmax.xlane.f32.xlu0 %v443
      %v445 = vpop.xlane.xlu0 %444
      %v446 = vsub.f32 %v440, %v445
      %v447 = vmul.f32 %v446, 1.442695
      %v448 = vpow.pop %v447
      %v449 = vsel %vm204, %v448, 0.0
      %450 = vadd.xlane.f32.xlu0 %v449
      %v451 = vpop.xlane.xlu0 %450
      %v452 = vrcp.pop %v451
      %v453 = vmul.f32 %v448, %v452
      %455 = vrot.lane.b32.xlu0 %v203, 120
      %v456 = vpop.permute.xlu0 %455
      %v459 = vsel %vm204, %v453, 0
      %461 = vmatprep.subr.mxu0 0.0
      %462 = vmatpush1.msra.mxu0 0.0
      %463 = vmatprep.subr.mxu0 0.0
      %464 = vmatpush1.msra.mxu0 0.0
      %465 = vmatprep.subr.mxu0 0.0
      %466 = vmatpush1.msra.mxu0 0.0
      %467 = vmatprep.subr.mxu0 0.0
      %468 = vmatpush1.msra.mxu0 0.0
      %469 = vmatprep.subr.mxu0 0.0
      %470 = vmatpush1.msra.mxu0 0.0
      %471 = vmatprep.subr.mxu0 0.0
      %472 = vmatpush1.msra.mxu0 0.0
      %473 = vmatprep.subr.mxu0 0.0
      %474 = vmatpush1.msra.mxu0 0.0
      %475 = vmatprep.subr.mxu0 0.0
      %476 = vmatpush1.msra.mxu0 0.0
      %477 = vmatprep.subr.mxu0 0.0
      %478 = vmatpush1.msra.mxu0 0.0
      %479 = vmatprep.subr.mxu0 0.0
      %480 = vmatpush1.msra.mxu0 0.0
      %481 = vmatprep.subr.mxu0 0.0
      %482 = vmatpush1.msra.mxu0 0.0
      %483 = vmatprep.subr.mxu0 0.0
      %484 = vmatpush1.msra.mxu0 0.0
      %485 = vmatprep.subr.mxu0 0.0
      %486 = vmatpush1.msra.mxu0 0.0
      %487 = vmatprep.subr.mxu0 0.0
      %488 = vmatpush1.msra.mxu0 0.0
      %489 = vmatprep.subr.mxu0 0.0
      %490 = vmatpush1.msra.mxu0 0.0
      %491 = vmatprep.subr.mxu0 0.0
      %492 = vmatpush1.msra.mxu0 %v456
      %493 = vmatprep.subr.mxu0 0.0
      %494 = vmatpush2.msra.mxu0 0.0
      %495 = vmatprep.subr.mxu0 0.0
      %496 = vmatpush2.msra.mxu0 0.0
      %497 = vmatprep.subr.mxu0 0.0
      %498 = vmatpush2.msra.mxu0 0.0
      %499 = vmatprep.subr.mxu0 0.0
      %500 = vmatpush2.msra.mxu0 0.0
      %501 = vmatprep.subr.mxu0 0.0
      %502 = vmatpush2.msra.mxu0 0.0
      %503 = vmatprep.subr.mxu0 0.0
      %504 = vmatpush2.msra.mxu0 0.0
      %505 = vmatprep.subr.mxu0 0.0
      %506 = vmatpush2.msra.mxu0 0.0
      %507 = vmatprep.subr.mxu0 0.0
      %508 = vmatpush2.msra.mxu0 0.0
      %509 = vmatprep.subr.mxu0 0.0
      %510 = vmatpush2.msra.mxu0 0.0
      %511 = vmatprep.subr.mxu0 0.0
      %512 = vmatpush2.msra.mxu0 0.0
      %513 = vmatprep.subr.mxu0 0.0
      %514 = vmatpush2.msra.mxu0 0.0
      %515 = vmatprep.subr.mxu0 0.0
      %516 = vmatpush2.msra.mxu0 0.0
      %517 = vmatprep.subr.mxu0 0.0
      %518 = vmatpush2.msra.mxu0 0.0
      %519 = vmatprep.subr.mxu0 0.0
      %520 = vmatpush2.msra.mxu0 0.0
      %521 = vmatprep.subr.mxu0 0.0
      %522 = vmatpush2.msra.mxu0 0.0
      %523 = vmatprep.subr.mxu0 0.0
      %524 = vmatpush2.msra.mxu0 0.0
      %525 = vmatprep.mubr.f32.mxu0 0.0
      %526 = vmatmul.mubr.f32.gmra.mxu0 %v459
      %v527 = vpop.f32.mrf.mxu0
      %v528 = vadd.f32 0.0, %v527
      %v529 = vpop.f32.mrf.mxu0
      %530 = vdwg.mxu0
      %531 = vrot.lane.b32.xlu0 %v201, 112
      %v532 = vpop.permute.xlu0 %531
      %533 = vrot.lane.b32.xlu0 %v202, 112
      %v534 = vpop.permute.xlu0 %533
      %v535 = vsel %vm204, %v532, 0
      %v537 = vsel %vm204, %v534, 0
      %539 = vmatprep.subr.mxu0 0.0
      %540 = vmatpush1.xpose.msra.mxu0 0.0
      %541 = vmatprep.subr.mxu0 0.0
      %542 = vmatpush1.xpose.msra.mxu0 0.0
      %543 = vmatprep.subr.mxu0 0.0
      %544 = vmatpush1.xpose.msra.mxu0 0.0
      %545 = vmatprep.subr.mxu0 0.0
      %546 = vmatpush1.xpose.msra.mxu0 0.0
      %547 = vmatprep.subr.mxu0 0.0
      %548 = vmatpush1.xpose.msra.mxu0 0.0
      %549 = vmatprep.subr.mxu0 0.0
      %550 = vmatpush1.xpose.msra.mxu0 0.0
      %551 = vmatprep.subr.mxu0 0.0
      %552 = vmatpush1.xpose.msra.mxu0 0.0
      %553 = vmatprep.subr.mxu0 0.0
      %554 = vmatpush1.xpose.msra.mxu0 0.0
      %555 = vmatprep.subr.mxu0 0.0
      %556 = vmatpush1.xpose.msra.mxu0 0.0
      %557 = vmatprep.subr.mxu0 0.0
      %558 = vmatpush1.xpose.msra.mxu0 0.0
      %559 = vmatprep.subr.mxu0 0.0
      %560 = vmatpush1.xpose.msra.mxu0 0.0
      %561 = vmatprep.subr.mxu0 0.0
      %562 = vmatpush1.xpose.msra.mxu0 0.0
      %563 = vmatprep.subr.mxu0 0.0
      %564 = vmatpush1.xpose.msra.mxu0 0.0
      %565 = vmatprep.subr.mxu0 0.0
      %566 = vmatpush1.xpose.msra.mxu0 0.0
      %567 = vmatprep.subr.mxu0 0.0
      %568 = vmatpush1.xpose.msra.mxu0 0.0
      %569 = vmatprep.subr.mxu0 0.0
      %570 = vmatpush1.xpose.msra.mxu0 %v537
      %571 = vmatprep.subr.mxu0 0.0
      %572 = vmatpush2.xpose.msra.mxu0 0.0
      %573 = vmatprep.subr.mxu0 0.0
      %574 = vmatpush2.xpose.msra.mxu0 0.0
      %575 = vmatprep.subr.mxu0 0.0
      %576 = vmatpush2.xpose.msra.mxu0 0.0
      %577 = vmatprep.subr.mxu0 0.0
      %578 = vmatpush2.xpose.msra.mxu0 0.0
      %579 = vmatprep.subr.mxu0 0.0
      %580 = vmatpush2.xpose.msra.mxu0 0.0
      %581 = vmatprep.subr.mxu0 0.0
      %582 = vmatpush2.xpose.msra.mxu0 0.0
      %583 = vmatprep.subr.mxu0 0.0
      %584 = vmatpush2.xpose.msra.mxu0 0.0
      %585 = vmatprep.subr.mxu0 0.0
      %586 = vmatpush2.xpose.msra.mxu0 0.0
      %587 = vmatprep.subr.mxu0 0.0
      %588 = vmatpush2.xpose.msra.mxu0 0.0
      %589 = vmatprep.subr.mxu0 0.0
      %590 = vmatpush2.xpose.msra.mxu0 0.0
      %591 = vmatprep.subr.mxu0 0.0
      %592 = vmatpush2.xpose.msra.mxu0 0.0
      %593 = vmatprep.subr.mxu0 0.0
      %594 = vmatpush2.xpose.msra.mxu0 0.0
      %595 = vmatprep.subr.mxu0 0.0
      %596 = vmatpush2.xpose.msra.mxu0 0.0
      %597 = vmatprep.subr.mxu0 0.0
      %598 = vmatpush2.xpose.msra.mxu0 0.0
      %599 = vmatprep.subr.mxu0 0.0
      %600 = vmatpush2.xpose.msra.mxu0 0.0
      %601 = vmatprep.subr.mxu0 0.0
      %602 = vmatpush2.xpose.msra.mxu0 0.0
      %603 = vmatprep.mubr.f32.mxu0 0.0
      %604 = vmatmul.mubr.f32.gmra.mxu0 %v535
      %v605 = vpop.f32.mrf.mxu0
      %v606 = vadd.f32 0.0, %v605
      %v607 = vpop.f32.mrf.mxu0
      %608 = vdwg.mxu0
      %v609 = vsel %vm204, %v606, -inf
      %610 = vmax.xlane.f32.xlu0 %v609
      %v611 = vpop.xlane.xlu0 %610
      %v612 = vsub.f32 %v606, %v611
      %v613 = vmul.f32 %v612, 1.442695
      %v614 = vpow.pop %v613
      %v615 = vsel %vm204, %v614, 0.0
      %616 = vadd.xlane.f32.xlu0 %v615
      %v617 = vpop.xlane.xlu0 %616
      %v618 = vrcp.pop %v617
      %v619 = vmul.f32 %v614, %v618
      %620 = vrot.lane.b32.xlu0 %v203, 112
      %v621 = vpop.permute.xlu0 %620
      %v624 = vsel %vm204, %v619, 0
      %626 = vmatprep.subr.mxu0 0.0
      %627 = vmatpush1.msra.mxu0 0.0
      %628 = vmatprep.subr.mxu0 0.0
      %629 = vmatpush1.msra.mxu0 0.0
      %630 = vmatprep.subr.mxu0 0.0
      %631 = vmatpush1.msra.mxu0 0.0
      %632 = vmatprep.subr.mxu0 0.0
      %633 = vmatpush1.msra.mxu0 0.0
      %634 = vmatprep.subr.mxu0 0.0
      %635 = vmatpush1.msra.mxu0 0.0
      %636 = vmatprep.subr.mxu0 0.0
      %637 = vmatpush1.msra.mxu0 0.0
      %638 = vmatprep.subr.mxu0 0.0
      %639 = vmatpush1.msra.mxu0 0.0
      %640 = vmatprep.subr.mxu0 0.0
      %641 = vmatpush1.msra.mxu0 0.0
      %642 = vmatprep.subr.mxu0 0.0
      %643 = vmatpush1.msra.mxu0 0.0
      %644 = vmatprep.subr.mxu0 0.0
      %645 = vmatpush1.msra.mxu0 0.0
      %646 = vmatprep.subr.mxu0 0.0
      %647 = vmatpush1.msra.mxu0 0.0
      %648 = vmatprep.subr.mxu0 0.0
      %649 = vmatpush1.msra.mxu0 0.0
      %650 = vmatprep.subr.mxu0 0.0
      %651 = vmatpush1.msra.mxu0 0.0
      %652 = vmatprep.subr.mxu0 0.0
      %653 = vmatpush1.msra.mxu0 0.0
      %654 = vmatprep.subr.mxu0 0.0
      %655 = vmatpush1.msra.mxu0 0.0
      %656 = vmatprep.subr.mxu0 0.0
      %657 = vmatpush1.msra.mxu0 %v621
      %658 = vmatprep.subr.mxu0 0.0
      %659 = vmatpush2.msra.mxu0 0.0
      %660 = vmatprep.subr.mxu0 0.0
      %661 = vmatpush2.msra.mxu0 0.0
      %662 = vmatprep.subr.mxu0 0.0
      %663 = vmatpush2.msra.mxu0 0.0
      %664 = vmatprep.subr.mxu0 0.0
      %665 = vmatpush2.msra.mxu0 0.0
      %666 = vmatprep.subr.mxu0 0.0
      %667 = vmatpush2.msra.mxu0 0.0
      %668 = vmatprep.subr.mxu0 0.0
      %669 = vmatpush2.msra.mxu0 0.0
      %670 = vmatprep.subr.mxu0 0.0
      %671 = vmatpush2.msra.mxu0 0.0
      %672 = vmatprep.subr.mxu0 0.0
      %673 = vmatpush2.msra.mxu0 0.0
      %674 = vmatprep.subr.mxu0 0.0
      %675 = vmatpush2.msra.mxu0 0.0
      %676 = vmatprep.subr.mxu0 0.0
      %677 = vmatpush2.msra.mxu0 0.0
      %678 = vmatprep.subr.mxu0 0.0
      %679 = vmatpush2.msra.mxu0 0.0
      %680 = vmatprep.subr.mxu0 0.0
      %681 = vmatpush2.msra.mxu0 0.0
      %682 = vmatprep.subr.mxu0 0.0
      %683 = vmatpush2.msra.mxu0 0.0
      %684 = vmatprep.subr.mxu0 0.0
      %685 = vmatpush2.msra.mxu0 0.0
      %686 = vmatprep.subr.mxu0 0.0
      %687 = vmatpush2.msra.mxu0 0.0
      %688 = vmatprep.subr.mxu0 0.0
      %689 = vmatpush2.msra.mxu0 0.0
      %690 = vmatprep.mubr.f32.mxu0 0.0
      %691 = vmatmul.mubr.f32.gmra.mxu0 %v624
      %v692 = vpop.f32.mrf.mxu0
      %v693 = vadd.f32 0.0, %v692
      %v694 = vpop.f32.mrf.mxu0
      %695 = vdwg.mxu0
      %696 = vrot.lane.b32.xlu0 %v201, 104
      %v697 = vpop.permute.xlu0 %696
      %698 = vrot.lane.b32.xlu0 %v202, 104
      %v699 = vpop.permute.xlu0 %698
      %v700 = vsel %vm204, %v697, 0
      %v702 = vsel %vm204, %v699, 0
      %704 = vmatprep.subr.mxu0 0.0
      %705 = vmatpush1.xpose.msra.mxu0 0.0
      %706 = vmatprep.subr.mxu0 0.0
      %707 = vmatpush1.xpose.msra.mxu0 0.0
      %708 = vmatprep.subr.mxu0 0.0
      %709 = vmatpush1.xpose.msra.mxu0 0.0
      %710 = vmatprep.subr.mxu0 0.0
      %711 = vmatpush1.xpose.msra.mxu0 0.0
      %712 = vmatprep.subr.mxu0 0.0
      %713 = vmatpush1.xpose.msra.mxu0 0.0
      %714 = vmatprep.subr.mxu0 0.0
      %715 = vmatpush1.xpose.msra.mxu0 0.0
      %716 = vmatprep.subr.mxu0 0.0
      %717 = vmatpush1.xpose.msra.mxu0 0.0
      %718 = vmatprep.subr.mxu0 0.0
      %719 = vmatpush1.xpose.msra.mxu0 0.0
      %720 = vmatprep.subr.mxu0 0.0
      %721 = vmatpush1.xpose.msra.mxu0 0.0
      %722 = vmatprep.subr.mxu0 0.0
      %723 = vmatpush1.xpose.msra.mxu0 0.0
      %724 = vmatprep.subr.mxu0 0.0
      %725 = vmatpush1.xpose.msra.mxu0 0.0
      %726 = vmatprep.subr.mxu0 0.0
      %727 = vmatpush1.xpose.msra.mxu0 0.0
      %728 = vmatprep.subr.mxu0 0.0
      %729 = vmatpush1.xpose.msra.mxu0 0.0
      %730 = vmatprep.subr.mxu0 0.0
      %731 = vmatpush1.xpose.msra.mxu0 0.0
      %732 = vmatprep.subr.mxu0 0.0
      %733 = vmatpush1.xpose.msra.mxu0 0.0
      %734 = vmatprep.subr.mxu0 0.0
      %735 = vmatpush1.xpose.msra.mxu0 %v702
      %736 = vmatprep.subr.mxu0 0.0
      %737 = vmatpush2.xpose.msra.mxu0 0.0
      %738 = vmatprep.subr.mxu0 0.0
      %739 = vmatpush2.xpose.msra.mxu0 0.0
      %740 = vmatprep.subr.mxu0 0.0
      %741 = vmatpush2.xpose.msra.mxu0 0.0
      %742 = vmatprep.subr.mxu0 0.0
      %743 = vmatpush2.xpose.msra.mxu0 0.0
      %744 = vmatprep.subr.mxu0 0.0
      %745 = vmatpush2.xpose.msra.mxu0 0.0
      %746 = vmatprep.subr.mxu0 0.0
      %747 = vmatpush2.xpose.msra.mxu0 0.0
      %748 = vmatprep.subr.mxu0 0.0
      %749 = vmatpush2.xpose.msra.mxu0 0.0
      %750 = vmatprep.subr.mxu0 0.0
      %751 = vmatpush2.xpose.msra.mxu0 0.0
      %752 = vmatprep.subr.mxu0 0.0
      %753 = vmatpush2.xpose.msra.mxu0 0.0
      %754 = vmatprep.subr.mxu0 0.0
      %755 = vmatpush2.xpose.msra.mxu0 0.0
      %756 = vmatprep.subr.mxu0 0.0
      %757 = vmatpush2.xpose.msra.mxu0 0.0
      %758 = vmatprep.subr.mxu0 0.0
      %759 = vmatpush2.xpose.msra.mxu0 0.0
      %760 = vmatprep.subr.mxu0 0.0
      %761 = vmatpush2.xpose.msra.mxu0 0.0
      %762 = vmatprep.subr.mxu0 0.0
      %763 = vmatpush2.xpose.msra.mxu0 0.0
      %764 = vmatprep.subr.mxu0 0.0
      %765 = vmatpush2.xpose.msra.mxu0 0.0
      %766 = vmatprep.subr.mxu0 0.0
      %767 = vmatpush2.xpose.msra.mxu0 0.0
      %768 = vmatprep.mubr.f32.mxu0 0.0
      %769 = vmatmul.mubr.f32.gmra.mxu0 %v700
      %v770 = vpop.f32.mrf.mxu0
      %v771 = vadd.f32 0.0, %v770
      %v772 = vpop.f32.mrf.mxu0
      %773 = vdwg.mxu0
      %v774 = vsel %vm204, %v771, -inf
      %775 = vmax.xlane.f32.xlu0 %v774
      %v776 = vpop.xlane.xlu0 %775
      %v777 = vsub.f32 %v771, %v776
      %v778 = vmul.f32 %v777, 1.442695
      %v779 = vpow.pop %v778
      %v780 = vsel %vm204, %v779, 0.0
      %781 = vadd.xlane.f32.xlu0 %v780
      %v782 = vpop.xlane.xlu0 %781
      %v783 = vrcp.pop %v782
      %v784 = vmul.f32 %v779, %v783
      %785 = vrot.lane.b32.xlu0 %v203, 104
      %v786 = vpop.permute.xlu0 %785
      %v789 = vsel %vm204, %v784, 0
      %791 = vmatprep.subr.mxu0 0.0
      %792 = vmatpush1.msra.mxu0 0.0
      %793 = vmatprep.subr.mxu0 0.0
      %794 = vmatpush1.msra.mxu0 0.0
      %795 = vmatprep.subr.mxu0 0.0
      %796 = vmatpush1.msra.mxu0 0.0
      %797 = vmatprep.subr.mxu0 0.0
      %798 = vmatpush1.msra.mxu0 0.0
      %799 = vmatprep.subr.mxu0 0.0
      %800 = vmatpush1.msra.mxu0 0.0
      %801 = vmatprep.subr.mxu0 0.0
      %802 = vmatpush1.msra.mxu0 0.0
      %803 = vmatprep.subr.mxu0 0.0
      %804 = vmatpush1.msra.mxu0 0.0
      %805 = vmatprep.subr.mxu0 0.0
      %806 = vmatpush1.msra.mxu0 0.0
      %807 = vmatprep.subr.mxu0 0.0
      %808 = vmatpush1.msra.mxu0 0.0
      %809 = vmatprep.subr.mxu0 0.0
      %810 = vmatpush1.msra.mxu0 0.0
      %811 = vmatprep.subr.mxu0 0.0
      %812 = vmatpush1.msra.mxu0 0.0
      %813 = vmatprep.subr.mxu0 0.0
      %814 = vmatpush1.msra.mxu0 0.0
      %815 = vmatprep.subr.mxu0 0.0
      %816 = vmatpush1.msra.mxu0 0.0
      %817 = vmatprep.subr.mxu0 0.0
      %818 = vmatpush1.msra.mxu0 0.0
      %819 = vmatprep.subr.mxu0 0.0
      %820 = vmatpush1.msra.mxu0 0.0
      %821 = vmatprep.subr.mxu0 0.0
      %822 = vmatpush1.msra.mxu0 %v786
      %823 = vmatprep.subr.mxu0 0.0
      %824 = vmatpush2.msra.mxu0 0.0
      %825 = vmatprep.subr.mxu0 0.0
      %826 = vmatpush2.msra.mxu0 0.0
      %827 = vmatprep.subr.mxu0 0.0
      %828 = vmatpush2.msra.mxu0 0.0
      %829 = vmatprep.subr.mxu0 0.0
      %830 = vmatpush2.msra.mxu0 0.0
      %831 = vmatprep.subr.mxu0 0.0
      %832 = vmatpush2.msra.mxu0 0.0
      %833 = vmatprep.subr.mxu0 0.0
      %834 = vmatpush2.msra.mxu0 0.0
      %835 = vmatprep.subr.mxu0 0.0
      %836 = vmatpush2.msra.mxu0 0.0
      %837 = vmatprep.subr.mxu0 0.0
      %838 = vmatpush2.msra.mxu0 0.0
      %839 = vmatprep.subr.mxu0 0.0
      %840 = vmatpush2.msra.mxu0 0.0
      %841 = vmatprep.subr.mxu0 0.0
      %842 = vmatpush2.msra.mxu0 0.0
      %843 = vmatprep.subr.mxu0 0.0
      %844 = vmatpush2.msra.mxu0 0.0
      %845 = vmatprep.subr.mxu0 0.0
      %846 = vmatpush2.msra.mxu0 0.0
      %847 = vmatprep.subr.mxu0 0.0
      %848 = vmatpush2.msra.mxu0 0.0
      %849 = vmatprep.subr.mxu0 0.0
      %850 = vmatpush2.msra.mxu0 0.0
      %851 = vmatprep.subr.mxu0 0.0
      %852 = vmatpush2.msra.mxu0 0.0
      %853 = vmatprep.subr.mxu0 0.0
      %854 = vmatpush2.msra.mxu0 0.0
      %855 = vmatprep.mubr.f32.mxu0 0.0
      %856 = vmatmul.mubr.f32.gmra.mxu0 %v789
      %v857 = vpop.f32.mrf.mxu0
      %v858 = vadd.f32 0.0, %v857
      %v859 = vpop.f32.mrf.mxu0
      %860 = vdwg.mxu0
      %862 = vrot.lane.b32.xlu0 %v528, 8
      %v863 = vpop.permute.xlu0 %862
      %866 = vrot.lane.b32.xlu0 %v693, 16
      %v867 = vpop.permute.xlu0 %866
      %870 = vrot.lane.b32.xlu0 %v858, 24
      %v871 = vpop.permute.xlu0 %870
      %v873 = vsel %vm204, %v362, %v863
      %vm874 = vcmask 130048
      %v875 = vsel %vm874, %v873, %v867
      %vm876 = vcmask 195584
      %v877 = vsel %vm876, %v875, %v871
      %vm878 = vcmask 261120
      %879 = vst.msk [vmem:[%s199] sm:$0xff] %vm878, %v877
      %p880 = scmp.lt.s32.totalorder %s14, 1
      %s881 = scalar_select %p880, %s14, 1
      %s882 = smul.addr %s881, 8
      %s883 = scalar_lea.vmem %s3, %s882
      // Predicated region
      $region33: #{transformer_forward.30} parent=31 // pred_check
        %p884 = pneg %p110
      $region34: #{transformer_forward.30} parent=31 // pred_check_branch
        %886 = sbr.rel (%p884) target = $region36
      $region35: #{transformer_forward.30} parent=31 // pred_region
        _
      $region36: #{transformer_forward.30} parent=31 // pred_fallthru
        _
    $region32: #{transformer_forward.30} parent=5 // pred_fallthru
      _
    %p887 = scmp.le.s32.totalorder 2, %s9
    // Predicated region
    $region37: #{transformer_forward.30} parent=5 // pred_check
      %p888 = pneg %p887
    $region38: #{transformer_forward.30} parent=5 // pred_check_branch
      %890 = sbr.rel (%p888) target = $region40
    $region39: #{transformer_forward.30} parent=5 // pred_region
      %s891 = ssub.s32 %s9, 2
      // Predicated region
      $region41: #{transformer_forward.30} parent=39 // pred_check
        %p892 = pneg %p116
      $region42: #{transformer_forward.30} parent=39 // pred_check_branch
        %894 = sbr.rel (%p892) target = $region44
      $region43: #{transformer_forward.30} parent=39 // pred_region
        %p895 = scmp.lt.s32.totalorder %s15, 1
        %s896 = scalar_select %p895, %s15, 1
        %s897 = smul.addr %s896, 8
        %s898 = scalar_lea.vmem %s3, %s897
      $region44: #{transformer_forward.30} parent=39 // pred_fallthru
        _
    $region40: #{transformer_forward.30} parent=5 // pred_fallthru
      _
  $region6: #{transformer_forward.30} parent=0 // loop_footer
    %s13 = sadd.s32 1, %s9
  $region7: #{transformer_forward.30} parent=0 // loop_footer_branch
    %8 = sbr.rel target = $region3
  $region8: #{transformer_forward.30} parent=0 // loop_exit
    _

// kernel: transformer_forward.33
$region0: #{transformer_forward.33}
  #allocation0 [shape = 'u32[]', space=smem, size = 0x4, offset = 0x4, fixed_abs, tag = 'smem constant byte address 0x4 - core index']
  #allocation1 [shape = 'u32[144,128]{1,0:T(1,128)}', space=vmem, size = 0x12000, scoped, tag = 'internal scratch']
  #allocation2 [shape = 'f32[16,32]{1,0:T(8,128)}', space=vmem, size = 0x2000, scoped, tag = 'scratch operand']
  %s0 = inlined_call_operand.vmem [shape: f32[16,128], index: 0, kind: input, shape index: {}]
  %s1 = inlined_call_operand.vmem [shape: f32[128,32], index: 1, kind: input, shape index: {}]
  %s2 = inlined_call_operand.vmem [shape: f32[1,32], index: 2, kind: input, shape index: {}]
  %s3 = inlined_call_operand.vmem [shape: f32[16,32], index: 3, kind: input, shape index: {}]
  %s4 = inlined_call_operand.vmem [shape: f32[1,32], index: 4, kind: input, shape index: {}]
  %s5 = inlined_call_operand.vmem [shape: f32[1,32], index: 5, kind: input, shape index: {}]
  %s6 = inlined_call_operand.vmem [shape: f32[16,32], index: 6, kind: output, shape index: {}]
  %s7 = sld [smem:[#allocation0]]
  $region42: #{transformer_forward.33} parent=0
    _
  %s9 = ssub.s32 1, %s7
  %s10 = scalar_select 0, %s9, %s7
  // Predicated region
  $region2: #{transformer_forward.33} parent=0 // pred_check
    _
  $region3: #{transformer_forward.33} parent=0 // pred_check_branch
    %12 = sbr.rel (0) target = $region5
  $region4: #{transformer_forward.33} parent=0 // pred_region
    _
  $region5: #{transformer_forward.33} parent=0 // pred_fallthru
    _
  // Predicated region
  $region6: #{transformer_forward.33} parent=0 // pred_check
    _
  $region7: #{transformer_forward.33} parent=0 // pred_check_branch
    %14 = sbr.rel (0) target = $region9
  $region8: #{transformer_forward.33} parent=0 // pred_region
    _
  $region9: #{transformer_forward.33} parent=0 // pred_fallthru
    _
  // Predicated region
  $region10: #{transformer_forward.33} parent=0 // pred_check
    _
  $region11: #{transformer_forward.33} parent=0 // pred_check_branch
    %16 = sbr.rel (0) target = $region13
  $region12: #{transformer_forward.33} parent=0 // pred_region
    _
  $region13: #{transformer_forward.33} parent=0 // pred_fallthru
    _
  // Predicated region
  $region14: #{transformer_forward.33} parent=0 // pred_check
    _
  $region15: #{transformer_forward.33} parent=0 // pred_check_branch
    %18 = sbr.rel (0) target = $region17
  $region16: #{transformer_forward.33} parent=0 // pred_region
    _
  $region17: #{transformer_forward.33} parent=0 // pred_fallthru
    _
  // Predicated region
  $region18: #{transformer_forward.33} parent=0 // pred_check
    _
  $region19: #{transformer_forward.33} parent=0 // pred_check_branch
    %20 = sbr.rel (0) target = $region21
  $region20: #{transformer_forward.33} parent=0 // pred_region
    _
  $region21: #{transformer_forward.33} parent=0 // pred_fallthru
    _
  // Predicated region
  $region22: #{transformer_forward.33} parent=0 // pred_check
    _
  $region23: #{transformer_forward.33} parent=0 // pred_check_branch
    %22 = sbr.rel (0) target = $region25
  $region24: #{transformer_forward.33} parent=0 // pred_region
    _
  $region25: #{transformer_forward.33} parent=0 // pred_fallthru
    _
  %p23 = scmp.eq.s32.totalorder 0, 0
  // Predicated region
  $region26: #{transformer_forward.33} parent=0 // pred_check
    %p24 = pneg %p23
  $region27: #{transformer_forward.33} parent=0 // pred_check_branch
    %26 = sbr.rel (%p24) target = $region29
  $region28: #{transformer_forward.33} parent=0 // pred_region
    %vm27 = vcmask 261120
    %28 = vst.msk [vmem:[#allocation2] sm:$0xff] %vm27, 0.0
    %29 = vst.msk [vmem:[#allocation2 + $0x8] sm:$0xff] %vm27, 0.0
  $region29: #{transformer_forward.33} parent=0 // pred_fallthru
    _
  %v30 = vld [vmem:[#allocation2] sm:$0xff]
  %v31 = vld [vmem:[#allocation2 + $0x8] sm:$0xff]
  %v32 = vld [vmem:[%s0] sm:$0xff]
  %v33 = vld [vmem:[%s0 + $0x8] sm:$0xff]
  %v34 = vld [vmem:[%s1] sm:$0xff]
  %v35 = vld [vmem:[%s1 + $0x8] sm:$0xff]
  %v36 = vld [vmem:[%s1 + $0x10] sm:$0xff]
  %v37 = vld [vmem:[%s1 + $0x18] sm:$0xff]
  %v38 = vld [vmem:[%s1 + $0x20] sm:$0xff]
  %v39 = vld [vmem:[%s1 + $0x28] sm:$0xff]
  %v40 = vld [vmem:[%s1 + $0x30] sm:$0xff]
  %v41 = vld [vmem:[%s1 + $0x38] sm:$0xff]
  %v42 = vld [vmem:[%s1 + $0x40] sm:$0xff]
  %v43 = vld [vmem:[%s1 + $0x48] sm:$0xff]
  %v44 = vld [vmem:[%s1 + $0x50] sm:$0xff]
  %v45 = vld [vmem:[%s1 + $0x58] sm:$0xff]
  %v46 = vld [vmem:[%s1 + $0x60] sm:$0xff]
  %v47 = vld [vmem:[%s1 + $0x68] sm:$0xff]
  %v48 = vld [vmem:[%s1 + $0x70] sm:$0xff]
  %v49 = vld [vmem:[%s1 + $0x78] sm:$0xff]
  %50 = vmatprep.subr.mxu0 0.0
  %51 = vmatpush1.msra.mxu0 %v49
  %52 = vmatprep.subr.mxu0 0.0
  %53 = vmatpush1.msra.mxu0 %v48
  %54 = vmatprep.subr.mxu0 0.0
  %55 = vmatpush1.msra.mxu0 %v47
  %56 = vmatprep.subr.mxu0 0.0
  %57 = vmatpush1.msra.mxu0 %v46
  %58 = vmatprep.subr.mxu0 0.0
  %59 = vmatpush1.msra.mxu0 %v45
  %60 = vmatprep.subr.mxu0 0.0
  %61 = vmatpush1.msra.mxu0 %v44
  %62 = vmatprep.subr.mxu0 0.0
  %63 = vmatpush1.msra.mxu0 %v43
  %64 = vmatprep.subr.mxu0 0.0
  %65 = vmatpush1.msra.mxu0 %v42
  %66 = vmatprep.subr.mxu0 0.0
  %67 = vmatpush1.msra.mxu0 %v41
  %68 = vmatprep.subr.mxu0 0.0
  %69 = vmatpush1.msra.mxu0 %v40
  %70 = vmatprep.subr.mxu0 0.0
  %71 = vmatpush1.msra.mxu0 %v39
  %72 = vmatprep.subr.mxu0 0.0
  %73 = vmatpush1.msra.mxu0 %v38
  %74 = vmatprep.subr.mxu0 0.0
  %75 = vmatpush1.msra.mxu0 %v37
  %76 = vmatprep.subr.mxu0 0.0
  %77 = vmatpush1.msra.mxu0 %v36
  %78 = vmatprep.subr.mxu0 0.0
  %79 = vmatpush1.msra.mxu0 %v35
  %80 = vmatprep.subr.mxu0 0.0
  %81 = vmatpush1.msra.mxu0 %v34
  %82 = vmatprep.subr.mxu0 0.0
  %83 = vmatpush2.msra.mxu0 0.0
  %84 = vmatprep.subr.mxu0 0.0
  %85 = vmatpush2.msra.mxu0 0.0
  %86 = vmatprep.subr.mxu0 0.0
  %87 = vmatpush2.msra.mxu0 0.0
  %88 = vmatprep.subr.mxu0 0.0
  %89 = vmatpush2.msra.mxu0 0.0
  %90 = vmatprep.subr.mxu0 0.0
  %91 = vmatpush2.msra.mxu0 0.0
  %92 = vmatprep.subr.mxu0 0.0
  %93 = vmatpush2.msra.mxu0 0.0
  %94 = vmatprep.subr.mxu0 0.0
  %95 = vmatpush2.msra.mxu0 0.0
  %96 = vmatprep.subr.mxu0 0.0
  %97 = vmatpush2.msra.mxu0 0.0
  %98 = vmatprep.subr.mxu0 0.0
  %99 = vmatpush2.msra.mxu0 0.0
  %100 = vmatprep.subr.mxu0 0.0
  %101 = vmatpush2.msra.mxu0 0.0
  %102 = vmatprep.subr.mxu0 0.0
  %103 = vmatpush2.msra.mxu0 0.0
  %104 = vmatprep.subr.mxu0 0.0
  %105 = vmatpush2.msra.mxu0 0.0
  %106 = vmatprep.subr.mxu0 0.0
  %107 = vmatpush2.msra.mxu0 0.0
  %108 = vmatprep.subr.mxu0 0.0
  %109 = vmatpush2.msra.mxu0 0.0
  %110 = vmatprep.subr.mxu0 0.0
  %111 = vmatpush2.msra.mxu0 0.0
  %112 = vmatprep.subr.mxu0 0.0
  %113 = vmatpush2.msra.mxu0 0.0
  %114 = vmatprep.mubr.f32.mxu0 0.0
  %115 = vmatmul.mubr.f32.gmra.mxu0 %v32
  %v116 = vpop.f32.mrf.mxu0
  %v117 = vadd.f32 0.0, %v116
  %v118 = vpop.f32.mrf.mxu0
  %119 = vmatprep.mubr.f32.mxu0 0.0
  %120 = vmatmul.mubr.f32.gmra.mxu0 %v33
  %v121 = vpop.f32.mrf.mxu0
  %v122 = vadd.f32 0.0, %v121
  %v123 = vpop.f32.mrf.mxu0
  %124 = vdwg.mxu0
  %v125 = vadd.f32 %v30, %v117
  %v126 = vadd.f32 %v31, %v122
  %vm127 = vcmask 261120
  %128 = vst.msk [vmem:[#allocation2] sm:$0xff] %vm127, %v125
  %129 = vst.msk [vmem:[#allocation2 + $0x8] sm:$0xff] %vm127, %v126
  // Predicated region
  $region30: #{transformer_forward.33} parent=0 // pred_check
    %p130 = pneg %p23
  $region31: #{transformer_forward.33} parent=0 // pred_check_branch
    %132 = sbr.rel (%p130) target = $region33
  $region32: #{transformer_forward.33} parent=0 // pred_region
    %v133 = vld [vmem:[#allocation2] sm:$0xff]
    %v134 = vld [vmem:[#allocation2 + $0x8] sm:$0xff]
    %v135 = vld [vmem:[%s2] sm:$0x1]
    %v137 = vlaneseq
    %v138 = vshrl.u32 %v137, 7
    %v139 = vsub.s32 0, %v138
    %v140 = vrot.slane %v135, %v139
    %v142 = vadd.f32 %v133, %v140
    %v143 = vadd.f32 %v134, %v140
    %v144 = vld [vmem:[%s3] sm:$0xff]
    %v145 = vld [vmem:[%s3 + $0x8] sm:$0xff]
    %v146 = vadd.f32 %v142, %v144
    %v147 = vadd.f32 %v143, %v145
    %v148 = vsel %vm127, %v146, 0.0
    %149 = vadd.xlane.f32.xlu0 %v148
    %v150 = vpop.xlane.xlu0 %149
    %v151 = vsel %vm127, %v147, 0.0
    %152 = vadd.xlane.f32.xlu0 %v151
    %v153 = vpop.xlane.xlu0 %152
    %v154 = vrcp.pop 32.0
    %v155 = vmul.f32 %v150, %v154
    %v156 = vmul.f32 %v153, %v154
    %v157 = vsub.f32 %v146, %v155
    %v158 = vsub.f32 %v147, %v156
    %v159 = vmul.f32 %v157, %v157
    %v160 = vmul.f32 %v158, %v158
    %v161 = vsel %vm127, %v159, 0.0
    %162 = vadd.xlane.f32.xlu0 %v161
    %v163 = vpop.xlane.xlu0 %162
    %v164 = vsel %vm127, %v160, 0.0
    %165 = vadd.xlane.f32.xlu0 %v164
    %v166 = vpop.xlane.xlu0 %165
    %v167 = vmul.f32 %v163, %v154
    %v168 = vmul.f32 %v166, %v154
    %v169 = vadd.f32 %v167, 1e-05
    %v170 = vadd.f32 %v168, 1e-05
    %v171 = vrsqrt.pop %v169
    %v172 = vrsqrt.pop %v170
    %v173 = vmul.f32 %v157, %v171
    %v174 = vmul.f32 %v158, %v172
    %v175 = vld [vmem:[%s4] sm:$0x1]
    %v177 = vlaneseq
    %v178 = vshrl.u32 %v177, 7
    %v179 = vsub.s32 0, %v178
    %v180 = vrot.slane %v175, %v179
    %v182 = vmul.f32 %v173, %v180
    %v183 = vmul.f32 %v174, %v180
    %v184 = vld [vmem:[%s5] sm:$0x1]
    %v186 = vlaneseq
    %v187 = vshrl.u32 %v186, 7
    %v188 = vsub.s32 0, %v187
    %v189 = vrot.slane %v184, %v188
    %v191 = vadd.f32 %v182, %v189
    %v192 = vadd.f32 %v183, %v189
    %193 = vst.msk [vmem:[%s6] sm:$0xff] %vm127, %v191
    %194 = vst.msk [vmem:[%s6 + $0x8] sm:$0xff] %vm127, %v192
  $region33: #{transformer_forward.33} parent=0 // pred_fallthru
    _
  // Predicated region
  $region34: #{transformer_forward.33} parent=0 // pred_check
    _
  $region35: #{transformer_forward.33} parent=0 // pred_check_branch
    %196 = sbr.rel (0) target = $region37
  $region36: #{transformer_forward.33} parent=0 // pred_region
    _
  $region37: #{transformer_forward.33} parent=0 // pred_fallthru
    _
  // Predicated region
  $region38: #{transformer_forward.33} parent=0 // pred_check
    _
  $region39: #{transformer_forward.33} parent=0 // pred_check_branch
    %198 = sbr.rel (0) target = $region41
  $region40: #{transformer_forward.33} parent=0 // pred_region
    _
  $region41: #{transformer_forward.33} parent=0 // pred_fallthru
    _

// kernel: transformer_forward.57
$region0: #{transformer_forward.57}
  #allocation0 [shape = 'u32[]', space=smem, size = 0x4, offset = 0x4, fixed_abs, tag = 'smem constant byte address 0x4 - core index']
  #allocation1 [shape = 'u32[144,128]{1,0:T(1,128)}', space=vmem, size = 0x12000, scoped, tag = 'internal scratch']
  #allocation2 [shape = 'f32[16,128]{1,0:T(8,128)}', space=vmem, size = 0x2000, scoped, tag = 'scratch operand']
  %s0 = inlined_call_operand.vmem [shape: f32[16,32], index: 0, kind: input, shape index: {}]
  %s1 = inlined_call_operand.vmem [shape: f32[32,128], index: 1, kind: input, shape index: {}]
  %s2 = inlined_call_operand.vmem [shape: f32[1,128], index: 2, kind: input, shape index: {}]
  %s3 = inlined_call_operand.vmem [shape: f32[16,128], index: 3, kind: output, shape index: {}]
  %s4 = sld [smem:[#allocation0]]
  $region30: #{transformer_forward.57} parent=0
    _
  %s6 = ssub.s32 1, %s4
  %s7 = scalar_select 0, %s6, %s4
  // Predicated region
  $region2: #{transformer_forward.57} parent=0 // pred_check
    _
  $region3: #{transformer_forward.57} parent=0 // pred_check_branch
    %9 = sbr.rel (0) target = $region5
  $region4: #{transformer_forward.57} parent=0 // pred_region
    _
  $region5: #{transformer_forward.57} parent=0 // pred_fallthru
    _
  // Predicated region
  $region6: #{transformer_forward.57} parent=0 // pred_check
    _
  $region7: #{transformer_forward.57} parent=0 // pred_check_branch
    %11 = sbr.rel (0) target = $region9
  $region8: #{transformer_forward.57} parent=0 // pred_region
    _
  $region9: #{transformer_forward.57} parent=0 // pred_fallthru
    _
  // Predicated region
  $region10: #{transformer_forward.57} parent=0 // pred_check
    _
  $region11: #{transformer_forward.57} parent=0 // pred_check_branch
    %13 = sbr.rel (0) target = $region13
  $region12: #{transformer_forward.57} parent=0 // pred_region
    _
  $region13: #{transformer_forward.57} parent=0 // pred_fallthru
    _
  %p14 = scmp.eq.s32.totalorder 0, 0
  // Predicated region
  $region14: #{transformer_forward.57} parent=0 // pred_check
    %p15 = pneg %p14
  $region15: #{transformer_forward.57} parent=0 // pred_check_branch
    %17 = sbr.rel (%p15) target = $region17
  $region16: #{transformer_forward.57} parent=0 // pred_region
    %18 = vst [vmem:[#allocation2] sm:$0xff] 0.0
    %19 = vst [vmem:[#allocation2 + $0x8] sm:$0xff] 0.0
  $region17: #{transformer_forward.57} parent=0 // pred_fallthru
    _
  %v20 = vld [vmem:[#allocation2] sm:$0xff]
  %v21 = vld [vmem:[#allocation2 + $0x8] sm:$0xff]
  %v22 = vld [vmem:[%s0] sm:$0xff]
  %v23 = vld [vmem:[%s0 + $0x8] sm:$0xff]
  %v24 = vld [vmem:[%s1] sm:$0xff]
  %v25 = vld [vmem:[%s1 + $0x8] sm:$0xff]
  %v26 = vld [vmem:[%s1 + $0x10] sm:$0xff]
  %v27 = vld [vmem:[%s1 + $0x18] sm:$0xff]
  %vm28 = vcmask 261120
  %v30 = vsel %vm28, %v22, 0
  %v33 = vsel %vm28, %v23, 0
  %35 = vmatprep.subr.mxu0 0.0
  %36 = vmatpush1.msra.mxu0 0.0
  %37 = vmatprep.subr.mxu0 0.0
  %38 = vmatpush1.msra.mxu0 0.0
  %39 = vmatprep.subr.mxu0 0.0
  %40 = vmatpush1.msra.mxu0 0.0
  %41 = vmatprep.subr.mxu0 0.0
  %42 = vmatpush1.msra.mxu0 0.0
  %43 = vmatprep.subr.mxu0 0.0
  %44 = vmatpush1.msra.mxu0 0.0
  %45 = vmatprep.subr.mxu0 0.0
  %46 = vmatpush1.msra.mxu0 0.0
  %47 = vmatprep.subr.mxu0 0.0
  %48 = vmatpush1.msra.mxu0 0.0
  %49 = vmatprep.subr.mxu0 0.0
  %50 = vmatpush1.msra.mxu0 0.0
  %51 = vmatprep.subr.mxu0 0.0
  %52 = vmatpush1.msra.mxu0 0.0
  %53 = vmatprep.subr.mxu0 0.0
  %54 = vmatpush1.msra.mxu0 0.0
  %55 = vmatprep.subr.mxu0 0.0
  %56 = vmatpush1.msra.mxu0 0.0
  %57 = vmatprep.subr.mxu0 0.0
  %58 = vmatpush1.msra.mxu0 0.0
  %59 = vmatprep.subr.mxu0 0.0
  %60 = vmatpush1.msra.mxu0 %v27
  %61 = vmatprep.subr.mxu0 0.0
  %62 = vmatpush1.msra.mxu0 %v26
  %63 = vmatprep.subr.mxu0 0.0
  %64 = vmatpush1.msra.mxu0 %v25
  %65 = vmatprep.subr.mxu0 0.0
  %66 = vmatpush1.msra.mxu0 %v24
  %67 = vmatprep.subr.mxu0 0.0
  %68 = vmatpush2.msra.mxu0 0.0
  %69 = vmatprep.subr.mxu0 0.0
  %70 = vmatpush2.msra.mxu0 0.0
  %71 = vmatprep.subr.mxu0 0.0
  %72 = vmatpush2.msra.mxu0 0.0
  %73 = vmatprep.subr.mxu0 0.0
  %74 = vmatpush2.msra.mxu0 0.0
  %75 = vmatprep.subr.mxu0 0.0
  %76 = vmatpush2.msra.mxu0 0.0
  %77 = vmatprep.subr.mxu0 0.0
  %78 = vmatpush2.msra.mxu0 0.0
  %79 = vmatprep.subr.mxu0 0.0
  %80 = vmatpush2.msra.mxu0 0.0
  %81 = vmatprep.subr.mxu0 0.0
  %82 = vmatpush2.msra.mxu0 0.0
  %83 = vmatprep.subr.mxu0 0.0
  %84 = vmatpush2.msra.mxu0 0.0
  %85 = vmatprep.subr.mxu0 0.0
  %86 = vmatpush2.msra.mxu0 0.0
  %87 = vmatprep.subr.mxu0 0.0
  %88 = vmatpush2.msra.mxu0 0.0
  %89 = vmatprep.subr.mxu0 0.0
  %90 = vmatpush2.msra.mxu0 0.0
  %91 = vmatprep.subr.mxu0 0.0
  %92 = vmatpush2.msra.mxu0 0.0
  %93 = vmatprep.subr.mxu0 0.0
  %94 = vmatpush2.msra.mxu0 0.0
  %95 = vmatprep.subr.mxu0 0.0
  %96 = vmatpush2.msra.mxu0 0.0
  %97 = vmatprep.subr.mxu0 0.0
  %98 = vmatpush2.msra.mxu0 0.0
  %99 = vmatprep.mubr.f32.mxu0 0.0
  %100 = vmatmul.mubr.f32.gmra.mxu0 %v30
  %v101 = vpop.f32.mrf.mxu0
  %v102 = vadd.f32 0.0, %v101
  %v103 = vpop.f32.mrf.mxu0
  %104 = vmatprep.mubr.f32.mxu0 0.0
  %105 = vmatmul.mubr.f32.gmra.mxu0 %v33
  %v106 = vpop.f32.mrf.mxu0
  %v107 = vadd.f32 0.0, %v106
  %v108 = vpop.f32.mrf.mxu0
  %109 = vdwg.mxu0
  %v110 = vadd.f32 %v20, %v102
  %v111 = vadd.f32 %v21, %v107
  %112 = vst [vmem:[#allocation2] sm:$0xff] %v110
  %113 = vst [vmem:[#allocation2 + $0x8] sm:$0xff] %v111
  // Predicated region
  $region18: #{transformer_forward.57} parent=0 // pred_check
    %p114 = pneg %p14
  $region19: #{transformer_forward.57} parent=0 // pred_check_branch
    %116 = sbr.rel (%p114) target = $region21
  $region20: #{transformer_forward.57} parent=0 // pred_region
    %v117 = vld [vmem:[#allocation2] sm:$0xff]
    %v118 = vld [vmem:[#allocation2 + $0x8] sm:$0xff]
    %v119 = vld [vmem:[%s2] sm:$0x1]
    %v121 = vlaneseq
    %v122 = vshrl.u32 %v121, 7
    %v123 = vsub.s32 0, %v122
    %v124 = vrot.slane %v119, %v123
    %v126 = vadd.f32 %v117, %v124
    %v127 = vadd.f32 %v118, %v124
    %128 = vst [vmem:[%s3] sm:$0xff] %v126
    %129 = vst [vmem:[%s3 + $0x8] sm:$0xff] %v127
  $region21: #{transformer_forward.57} parent=0 // pred_fallthru
    _
  // Predicated region
  $region22: #{transformer_forward.57} parent=0 // pred_check
    _
  $region23: #{transformer_forward.57} parent=0 // pred_check_branch
    %131 = sbr.rel (0) target = $region25
  $region24: #{transformer_forward.57} parent=0 // pred_region
    _
  $region25: #{transformer_forward.57} parent=0 // pred_fallthru
    _
  // Predicated region
  $region26: #{transformer_forward.57} parent=0 // pred_check
    _
  $region27: #{transformer_forward.57} parent=0 // pred_check_branch
    %133 = sbr.rel (0) target = $region29
  $region28: #{transformer_forward.57} parent=0 // pred_region
    _
  $region29: #{transformer_forward.57} parent=0 // pred_fallthru
    _

</llo_original>
